<compile_context>
chip_gen: v5e
topology: v5e:2x2
jax: 0.10.0
libtpu: 0.0.40
codegen_flags: <defaults>
</compile_context>

<pallas_src>
import functools
import math

import jax
import jax.numpy as jnp
import numpy as np
from jax.experimental import pallas as pl
from jax.experimental.pallas import tpu as pltpu


def _feature_attention_body(x_ref, wqkv_ref, bqkv_ref, wo_ref, bo_ref,
                            gamma_ref, beta_ref, y_ref, attn_ref,
                            *, num_heads, head_dim, eps):
    seq_len, batch, embed_dim = x_ref.shape
    n_rows = batch * seq_len

    # ---- (S,B,E) -> (B*S,E) row regrouping (sublane-only relayout) ----
    # Built from leading-index ref loads + static sublane slices + axis-0
    # concats only, so it needs no transpose/reshape relayout support.
    x_rows = [x_ref[s].astype(jnp.float32) for s in range(seq_len)]   # each (B, E)
    x2 = jnp.concatenate(
        [jnp.concatenate([x_rows[s][b:b + 1, :] for s in range(seq_len)], axis=0)
         for b in range(batch)],
        axis=0)                                                        # (B*S, E)

    # ---- fused QKV projection over all rows: one MXU matmul ----
    # 1/sqrt(head_dim) is already folded into the q-columns of wqkv/bqkv.
    qkv = jnp.dot(x2, wqkv_ref[...],
                  preferred_element_type=jnp.float32) + bqkv_ref[...]  # (B*S, 3E)

    out = jnp.zeros((n_rows, embed_dim), jnp.float32)
    w_sums = [jnp.zeros((seq_len, seq_len), jnp.float32) for _ in range(batch)]

    for h in range(num_heads):                       # static unroll (H=4)
        lo = h * head_dim
        oh_parts = []
        for b in range(batch):                       # static unroll (B=2)
            r0 = b * seq_len
            qh = qkv[r0:r0 + seq_len, lo:lo + head_dim]                     # (S, hd)
            kh = qkv[r0:r0 + seq_len, embed_dim + lo:embed_dim + lo + head_dim]
            vh = qkv[r0:r0 + seq_len,
                     2 * embed_dim + lo:2 * embed_dim + lo + head_dim]

            # q @ k^T via dot_general with an rhs-contracting dim -> no
            # materialized transpose, feeds the MXU directly.
            scores = jax.lax.dot_general(
                qh, kh, (((1,), (1,)), ((), ())),
                preferred_element_type=jnp.float32)                         # (S, S)
            m = jnp.max(scores, axis=-1, keepdims=True)
            p = jnp.exp(scores - m)
            p = p * pl.reciprocal(jnp.sum(p, axis=-1, keepdims=True),
                                  approx=False)
            if attn_ref is not None:
                w_sums[b] = w_sums[b] + p
            oh_parts.append(jnp.dot(p, vh, preferred_element_type=jnp.float32))

        # One accumulating output-projection matmul per head over ALL rows.
        oh_full = jnp.concatenate(oh_parts, axis=0)                         # (B*S, hd)
        out = out + jnp.dot(oh_full, wo_ref[h],
                            preferred_element_type=jnp.float32)

    out = out + bo_ref[...]                                                 # (B*S, E)

    # Dropout (eval) = identity; residual + LayerNorm over the embed dim,
    # fused across all B*S rows.
    y2 = x2 + out
    mean = jnp.mean(y2, axis=-1, keepdims=True)
    var = jnp.mean((y2 - mean) ** 2, axis=-1, keepdims=True)
    y2 = (y2 - mean) * jax.lax.rsqrt(var + eps)
    y2 = y2 * gamma_ref[...] + beta_ref[...]

    # ---- (B*S,E) -> (S,B,E) output stores (sublane-only relayout) ----
    for s in range(seq_len):
        y_ref[s] = jnp.concatenate(
            [y2[b * seq_len + s:b * seq_len + s + 1, :] for b in range(batch)],
            axis=0).astype(y_ref.dtype)

    if attn_ref is not None:
        inv_h = 1.0 / num_heads
        for b in range(batch):
            attn_ref[b] = (w_sums[b] * inv_h).astype(attn_ref.dtype)


def _kernel_with_weights(x_ref, wqkv_ref, bqkv_ref, wo_ref, bo_ref, gamma_ref,
                         beta_ref, y_ref, attn_ref,
                         *, num_heads, head_dim, eps):
    _feature_attention_body(x_ref, wqkv_ref, bqkv_ref, wo_ref, bo_ref,
                            gamma_ref, beta_ref, y_ref, attn_ref,
                            num_heads=num_heads, head_dim=head_dim, eps=eps)


def _kernel_no_weights(x_ref, wqkv_ref, bqkv_ref, wo_ref, bo_ref, gamma_ref,
                       beta_ref, y_ref, *, num_heads, head_dim, eps):
    _feature_attention_body(x_ref, wqkv_ref, bqkv_ref, wo_ref, bo_ref,
                            gamma_ref, beta_ref, y_ref, None,
                            num_heads=num_heads, head_dim=head_dim, eps=eps)


@functools.partial(jax.jit, static_argnames=("num_heads", "need_weights"))
def feature_attention(x_sbe, params, *, num_heads, need_weights=True):
    """x_sbe: (S, B, E) float32 -- PyTorch MultiheadAttention default layout.

    Returns (y (S,B,E), attn (B,S,S) head-averaged) or (y, None).
    """
    S, B, E = x_sbe.shape
    head_dim = E // num_heads
    wq, wk, wv, bq, bk, bv, wo, bo, gamma, beta = params

    # Pack QKV and fold the attention scale into the q-columns (wrapper-side,
    # constant-folded against the parameters under jit).
    scale = 1.0 / math.sqrt(head_dim)
    wqkv = jnp.concatenate([wq * scale, wk, wv], axis=1)    # (E, 3E)
    bqkv = jnp.concatenate([bq * scale, bk, bv], axis=1)    # (1, 3E)
    wo_h = wo.reshape(num_heads, head_dim, E)               # (H, hd, E)

    vmem = pl.BlockSpec(memory_space=pltpu.MemorySpace.VMEM)

    # Advisory cost estimate: this call is cheap; let XLA schedule it tightly.
    flops = (2 * B * S * E * 3 * E                       # fused QKV projection
             + 2 * B * num_heads * S * S * head_dim * 2  # scores + PV
             + 2 * B * S * E * E                         # output projection
             + 12 * B * S * E)                           # residual + LayerNorm
    transcendentals = B * num_heads * S * S + B * S      # exp + rsqrt
    bytes_accessed = 4 * (2 * S * B * E
                          + (B * S * S if need_weights else 0)
                          + E * 3 * E + 3 * E + E * E + 3 * E)
    cost = pl.CostEstimate(flops=flops, transcendentals=transcendentals,
                           bytes_accessed=bytes_accessed)

    kw = dict(num_heads=num_heads, head_dim=head_dim, eps=1e-5)
    if need_weights:
        kernel = functools.partial(_kernel_with_weights, **kw)
        out_shape = (jax.ShapeDtypeStruct((S, B, E), jnp.float32),
                     jax.ShapeDtypeStruct((B, S, S), jnp.float32))
        out_specs = (vmem, vmem)
    else:
        kernel = functools.partial(_kernel_no_weights, **kw)
        out_shape = jax.ShapeDtypeStruct((S, B, E), jnp.float32)
        out_specs = vmem

    result = pl.pallas_call(
        kernel,
        out_shape=out_shape,
        in_specs=[vmem, vmem, vmem, vmem, vmem, vmem, vmem],
        out_specs=out_specs,
        cost_estimate=cost,
    )(x_sbe, wqkv, bqkv, wo_h, bo, gamma, beta)

    if need_weights:
        y_sbe, attn_bss = result
        return y_sbe, attn_bss
    return result, None


def _reference(x_sbe, params, num_heads):
    """Pure-JAX reference mirroring torch.nn.MultiheadAttention forward."""
    wq, wk, wv, bq, bk, bv, wo, bo, gamma, beta = params
    S, B, E = x_sbe.shape
    hd = E // num_heads
    x = jnp.transpose(x_sbe, (1, 0, 2))                     # (B, S, E)
    q = (x @ wq + bq) / math.sqrt(hd)
    k = x @ wk + bk
    v = x @ wv + bv

    def split(t):  # (B, S, E) -> (B, H, S, hd)
        return jnp.transpose(t.reshape(B, S, num_heads, hd), (0, 2, 1, 3))

    qh, kh, vh = split(q), split(k), split(v)
    scores = jnp.einsum('bhqd,bhkd->bhqk', qh, kh)
    p = jax.nn.softmax(scores, axis=-1)
    o = jnp.einsum('bhqk,bhkd->bhqd', p, vh)
    o = jnp.transpose(o, (0, 2, 1, 3)).reshape(B, S, E)
    out = o @ wo + bo
    y = x + out
    mean = y.mean(-1, keepdims=True)
    var = ((y - mean) ** 2).mean(-1, keepdims=True)
    y = (y - mean) / jnp.sqrt(var + 1e-5) * gamma + beta
    return jnp.transpose(y, (1, 0, 2)), p.mean(axis=1)


if __name__ == "__main__":
    EMBED_DIM, NUM_HEADS, SEQ, BATCH = 32, 4, 8, 2

    key = jax.random.PRNGKey(0)
    ks = jax.random.split(key, 8)
    std = 1.0 / math.sqrt(EMBED_DIM)
    # Weights stored pre-transposed so the kernel computes x @ W.
    wq = jax.random.normal(ks[0], (EMBED_DIM, EMBED_DIM), jnp.float32) * std
    wk = jax.random.normal(ks[1], (EMBED_DIM, EMBED_DIM), jnp.float32) * std
    wv = jax.random.normal(ks[2], (EMBED_DIM, EMBED_DIM), jnp.float32) * std
    wo = jax.random.normal(ks[3], (EMBED_DIM, EMBED_DIM), jnp.float32) * std
    bq = jax.random.normal(ks[4], (1, EMBED_DIM), jnp.float32) * 0.02
    bk = jax.random.normal(ks[5], (1, EMBED_DIM), jnp.float32) * 0.02
    bv = jax.random.normal(ks[6], (1, EMBED_DIM), jnp.float32) * 0.02
    bo = jnp.zeros((1, EMBED_DIM), jnp.float32)
    gamma = jnp.ones((1, EMBED_DIM), jnp.float32)            # LayerNorm defaults
    beta = jnp.zeros((1, EMBED_DIM), jnp.float32)
    params = (wq, wk, wv, bq, bk, bv, wo, bo, gamma, beta)

    x = jax.random.normal(ks[7], (SEQ, BATCH, EMBED_DIM), jnp.float32)

    # need_weights=True path (matches the PyTorch module's return signature).
    y, attn_w = feature_attention(x, params, num_heads=NUM_HEADS)
    jax.block_until_ready((y, attn_w))

    y_ref, w_ref = _reference(x, params, NUM_HEADS)
    np.testing.assert_allclose(np.asarray(y), np.asarray(y_ref),
                               rtol=1e-4, atol=1e-4)
    np.testing.assert_allclose(np.asarray(attn_w), np.asarray(w_ref),
                               rtol=1e-4, atol=1e-4)

    # need_weights=False path (weights output, its stores and accumulators
    # are dropped from the kernel entirely).
    y_nw, none_w = feature_attention(x, params, num_heads=NUM_HEADS,
                                     need_weights=False)
    jax.block_until_ready(y_nw)
    assert none_w is None
    np.testing.assert_allclose(np.asarray(y_nw), np.asarray(y_ref),
                               rtol=1e-4, atol=1e-4)

    print("KERNEL_OK")
</pallas_src>

<mosaic_0001>
module attributes {stable_mosaic.version = 11 : i64} {
  func.func @_kernel_with_weights(%arg0: memref<8x2x32xf32, #tpu.memory_space<vmem>>, %arg1: memref<32x96xf32, #tpu.memory_space<vmem>>, %arg2: memref<1x96xf32, #tpu.memory_space<vmem>>, %arg3: memref<4x8x32xf32, #tpu.memory_space<vmem>>, %arg4: memref<1x32xf32, #tpu.memory_space<vmem>>, %arg5: memref<1x32xf32, #tpu.memory_space<vmem>>, %arg6: memref<1x32xf32, #tpu.memory_space<vmem>>, %arg7: memref<8x2x32xf32, #tpu.memory_space<vmem>>, %arg8: memref<2x8x8xf32, #tpu.memory_space<vmem>>) attributes {dimension_semantics = [], scalar_prefetch = 0 : i64, scratch_operands = 0 : i64, tpu.core_type = #tpu.core_type<tc>} {
    %c0 = arith.constant 0 : index
    %c0_0 = arith.constant 0 : index
    %c0_1 = arith.constant 0 : index
    %0 = vector.load %arg0[%c0, %c0_0, %c0_1] : memref<8x2x32xf32, #tpu.memory_space<vmem>>, vector<1x2x32xf32>
    %1 = vector.shape_cast %0 : vector<1x2x32xf32> to vector<2x32xf32>
    %c1 = arith.constant 1 : index
    %c0_2 = arith.constant 0 : index
    %c0_3 = arith.constant 0 : index
    %2 = vector.load %arg0[%c1, %c0_2, %c0_3] : memref<8x2x32xf32, #tpu.memory_space<vmem>>, vector<1x2x32xf32>
    %3 = vector.shape_cast %2 : vector<1x2x32xf32> to vector<2x32xf32>
    %c2 = arith.constant 2 : index
    %c0_4 = arith.constant 0 : index
    %c0_5 = arith.constant 0 : index
    %4 = vector.load %arg0[%c2, %c0_4, %c0_5] : memref<8x2x32xf32, #tpu.memory_space<vmem>>, vector<1x2x32xf32>
    %5 = vector.shape_cast %4 : vector<1x2x32xf32> to vector<2x32xf32>
    %c3 = arith.constant 3 : index
    %c0_6 = arith.constant 0 : index
    %c0_7 = arith.constant 0 : index
    %6 = vector.load %arg0[%c3, %c0_6, %c0_7] : memref<8x2x32xf32, #tpu.memory_space<vmem>>, vector<1x2x32xf32>
    %7 = vector.shape_cast %6 : vector<1x2x32xf32> to vector<2x32xf32>
    %c4 = arith.constant 4 : index
    %c0_8 = arith.constant 0 : index
    %c0_9 = arith.constant 0 : index
    %8 = vector.load %arg0[%c4, %c0_8, %c0_9] : memref<8x2x32xf32, #tpu.memory_space<vmem>>, vector<1x2x32xf32>
    %9 = vector.shape_cast %8 : vector<1x2x32xf32> to vector<2x32xf32>
    %c5 = arith.constant 5 : index
    %c0_10 = arith.constant 0 : index
    %c0_11 = arith.constant 0 : index
    %10 = vector.load %arg0[%c5, %c0_10, %c0_11] : memref<8x2x32xf32, #tpu.memory_space<vmem>>, vector<1x2x32xf32>
    %11 = vector.shape_cast %10 : vector<1x2x32xf32> to vector<2x32xf32>
    %c6 = arith.constant 6 : index
    %c0_12 = arith.constant 0 : index
    %c0_13 = arith.constant 0 : index
    %12 = vector.load %arg0[%c6, %c0_12, %c0_13] : memref<8x2x32xf32, #tpu.memory_space<vmem>>, vector<1x2x32xf32>
    %13 = vector.shape_cast %12 : vector<1x2x32xf32> to vector<2x32xf32>
    %c7 = arith.constant 7 : index
    %c0_14 = arith.constant 0 : index
    %c0_15 = arith.constant 0 : index
    %14 = vector.load %arg0[%c7, %c0_14, %c0_15] : memref<8x2x32xf32, #tpu.memory_space<vmem>>, vector<1x2x32xf32>
    %15 = vector.shape_cast %14 : vector<1x2x32xf32> to vector<2x32xf32>
    %16 = vector.extract_strided_slice %1 {offsets = [0, 0], sizes = [1, 32], strides = [1, 1]} : vector<2x32xf32> to vector<1x32xf32>
    %17 = vector.extract_strided_slice %3 {offsets = [0, 0], sizes = [1, 32], strides = [1, 1]} : vector<2x32xf32> to vector<1x32xf32>
    %18 = vector.extract_strided_slice %5 {offsets = [0, 0], sizes = [1, 32], strides = [1, 1]} : vector<2x32xf32> to vector<1x32xf32>
    %19 = vector.extract_strided_slice %7 {offsets = [0, 0], sizes = [1, 32], strides = [1, 1]} : vector<2x32xf32> to vector<1x32xf32>
    %20 = vector.extract_strided_slice %9 {offsets = [0, 0], sizes = [1, 32], strides = [1, 1]} : vector<2x32xf32> to vector<1x32xf32>
    %21 = vector.extract_strided_slice %11 {offsets = [0, 0], sizes = [1, 32], strides = [1, 1]} : vector<2x32xf32> to vector<1x32xf32>
    %22 = vector.extract_strided_slice %13 {offsets = [0, 0], sizes = [1, 32], strides = [1, 1]} : vector<2x32xf32> to vector<1x32xf32>
    %23 = vector.extract_strided_slice %15 {offsets = [0, 0], sizes = [1, 32], strides = [1, 1]} : vector<2x32xf32> to vector<1x32xf32>
    %24 = tpu.concatenate %16, %17, %18, %19, %20, %21, %22, %23 in 0 : vector<1x32xf32>, vector<1x32xf32>, vector<1x32xf32>, vector<1x32xf32>, vector<1x32xf32>, vector<1x32xf32>, vector<1x32xf32>, vector<1x32xf32> -> vector<8x32xf32>
    %25 = vector.extract_strided_slice %1 {offsets = [1, 0], sizes = [1, 32], strides = [1, 1]} : vector<2x32xf32> to vector<1x32xf32>
    %26 = vector.extract_strided_slice %3 {offsets = [1, 0], sizes = [1, 32], strides = [1, 1]} : vector<2x32xf32> to vector<1x32xf32>
    %27 = vector.extract_strided_slice %5 {offsets = [1, 0], sizes = [1, 32], strides = [1, 1]} : vector<2x32xf32> to vector<1x32xf32>
    %28 = vector.extract_strided_slice %7 {offsets = [1, 0], sizes = [1, 32], strides = [1, 1]} : vector<2x32xf32> to vector<1x32xf32>
    %29 = vector.extract_strided_slice %9 {offsets = [1, 0], sizes = [1, 32], strides = [1, 1]} : vector<2x32xf32> to vector<1x32xf32>
    %30 = vector.extract_strided_slice %11 {offsets = [1, 0], sizes = [1, 32], strides = [1, 1]} : vector<2x32xf32> to vector<1x32xf32>
    %31 = vector.extract_strided_slice %13 {offsets = [1, 0], sizes = [1, 32], strides = [1, 1]} : vector<2x32xf32> to vector<1x32xf32>
    %32 = vector.extract_strided_slice %15 {offsets = [1, 0], sizes = [1, 32], strides = [1, 1]} : vector<2x32xf32> to vector<1x32xf32>
    %33 = tpu.concatenate %25, %26, %27, %28, %29, %30, %31, %32 in 0 : vector<1x32xf32>, vector<1x32xf32>, vector<1x32xf32>, vector<1x32xf32>, vector<1x32xf32>, vector<1x32xf32>, vector<1x32xf32>, vector<1x32xf32> -> vector<8x32xf32>
    %34 = tpu.concatenate %24, %33 in 0 : vector<8x32xf32>, vector<8x32xf32> -> vector<16x32xf32>
    %c0_16 = arith.constant 0 : index
    %c0_17 = arith.constant 0 : index
    %35 = vector.load %arg1[%c0_16, %c0_17] : memref<32x96xf32, #tpu.memory_space<vmem>>, vector<32x96xf32>
    %cst = arith.constant dense<0.000000e+00> : vector<16x96xf32>
    %36 = tpu.matmul %34, %35, %cst {dimension_numbers = #tpu.dot_dimension_numbers<[1], [0], [0], [1], [0, 0, 1, 1], [], []>} : vector<16x32xf32>, vector<32x96xf32>, vector<16x96xf32> -> vector<16x96xf32>
    %c0_18 = arith.constant 0 : index
    %c0_19 = arith.constant 0 : index
    %37 = vector.load %arg2[%c0_18, %c0_19] : memref<1x96xf32, #tpu.memory_space<vmem>>, vector<1x96xf32>
    %38 = vector.broadcast %37 : vector<1x96xf32> to vector<16x96xf32>
    %39 = arith.addf %36, %38 : vector<16x96xf32>
    %cst_20 = arith.constant 0.000000e+00 : f32
    %40 = vector.broadcast %cst_20 : f32 to vector<16x32xf32>
    %cst_21 = arith.constant 0.000000e+00 : f32
    %41 = vector.broadcast %cst_21 : f32 to vector<8x8xf32>
    %cst_22 = arith.constant 0.000000e+00 : f32
    %42 = vector.broadcast %cst_22 : f32 to vector<8x8xf32>
    %43 = vector.extract_strided_slice %39 {offsets = [0, 0], sizes = [8, 8], strides = [1, 1]} : vector<16x96xf32> to vector<8x8xf32>
    %44 = vector.extract_strided_slice %39 {offsets = [0, 32], sizes = [8, 8], strides = [1, 1]} : vector<16x96xf32> to vector<8x8xf32>
    %45 = vector.extract_strided_slice %39 {offsets = [0, 64], sizes = [8, 8], strides = [1, 1]} : vector<16x96xf32> to vector<8x8xf32>
    %cst_23 = arith.constant dense<0.000000e+00> : vector<8x8xf32>
    %46 = tpu.matmul %43, %44, %cst_23 {dimension_numbers = #tpu.dot_dimension_numbers<[1], [1], [0], [0], [0, 0, 1, 0], [], []>} : vector<8x8xf32>, vector<8x8xf32>, vector<8x8xf32> -> vector<8x8xf32>
    %cst_24 = arith.constant dense<0xFF800000> : vector<8xf32>
    %47 = vector.multi_reduction <maximumf>, %46, %cst_24 [1] : vector<8x8xf32> to vector<8xf32>
    %48 = vector.shape_cast %47 : vector<8xf32> to vector<8x1xf32>
    %49 = vector.broadcast %48 : vector<8x1xf32> to vector<8x8xf32>
    %50 = arith.subf %46, %49 : vector<8x8xf32>
    %51 = math.exp %50 : vector<8x8xf32>
    %cst_25 = arith.constant dense<0.000000e+00> : vector<8xf32>
    %52 = vector.multi_reduction <add>, %51, %cst_25 [1] : vector<8x8xf32> to vector<8xf32>
    %53 = vector.shape_cast %52 : vector<8xf32> to vector<8x1xf32>
    %54 = tpu.reciprocal %53 : vector<8x1xf32> -> vector<8x1xf32>
    %55 = vector.broadcast %54 : vector<8x1xf32> to vector<8x8xf32>
    %56 = arith.mulf %51, %55 : vector<8x8xf32>
    %57 = arith.addf %41, %56 : vector<8x8xf32>
    %cst_26 = arith.constant dense<0.000000e+00> : vector<8x8xf32>
    %58 = tpu.matmul %56, %45, %cst_26 {dimension_numbers = #tpu.dot_dimension_numbers<[1], [0], [0], [1], [0, 0, 1, 1], [], []>} : vector<8x8xf32>, vector<8x8xf32>, vector<8x8xf32> -> vector<8x8xf32>
    %59 = vector.extract_strided_slice %39 {offsets = [8, 0], sizes = [8, 8], strides = [1, 1]} : vector<16x96xf32> to vector<8x8xf32>
    %60 = vector.extract_strided_slice %39 {offsets = [8, 32], sizes = [8, 8], strides = [1, 1]} : vector<16x96xf32> to vector<8x8xf32>
    %61 = vector.extract_strided_slice %39 {offsets = [8, 64], sizes = [8, 8], strides = [1, 1]} : vector<16x96xf32> to vector<8x8xf32>
    %cst_27 = arith.constant dense<0.000000e+00> : vector<8x8xf32>
    %62 = tpu.matmul %59, %60, %cst_27 {dimension_numbers = #tpu.dot_dimension_numbers<[1], [1], [0], [0], [0, 0, 1, 0], [], []>} : vector<8x8xf32>, vector<8x8xf32>, vector<8x8xf32> -> vector<8x8xf32>
    %cst_28 = arith.constant dense<0xFF800000> : vector<8xf32>
    %63 = vector.multi_reduction <maximumf>, %62, %cst_28 [1] : vector<8x8xf32> to vector<8xf32>
    %64 = vector.shape_cast %63 : vector<8xf32> to vector<8x1xf32>
    %65 = vector.broadcast %64 : vector<8x1xf32> to vector<8x8xf32>
    %66 = arith.subf %62, %65 : vector<8x8xf32>
    %67 = math.exp %66 : vector<8x8xf32>
    %cst_29 = arith.constant dense<0.000000e+00> : vector<8xf32>
    %68 = vector.multi_reduction <add>, %67, %cst_29 [1] : vector<8x8xf32> to vector<8xf32>
    %69 = vector.shape_cast %68 : vector<8xf32> to vector<8x1xf32>
    %70 = tpu.reciprocal %69 : vector<8x1xf32> -> vector<8x1xf32>
    %71 = vector.broadcast %70 : vector<8x1xf32> to vector<8x8xf32>
    %72 = arith.mulf %67, %71 : vector<8x8xf32>
    %73 = arith.addf %42, %72 : vector<8x8xf32>
    %cst_30 = arith.constant dense<0.000000e+00> : vector<8x8xf32>
    %74 = tpu.matmul %72, %61, %cst_30 {dimension_numbers = #tpu.dot_dimension_numbers<[1], [0], [0], [1], [0, 0, 1, 1], [], []>} : vector<8x8xf32>, vector<8x8xf32>, vector<8x8xf32> -> vector<8x8xf32>
    %75 = tpu.concatenate %58, %74 in 0 : vector<8x8xf32>, vector<8x8xf32> -> vector<16x8xf32>
    %c0_31 = arith.constant 0 : index
    %c0_32 = arith.constant 0 : index
    %c0_33 = arith.constant 0 : index
    %76 = vector.load %arg3[%c0_31, %c0_32, %c0_33] : memref<4x8x32xf32, #tpu.memory_space<vmem>>, vector<1x8x32xf32>
    %77 = vector.shape_cast %76 : vector<1x8x32xf32> to vector<8x32xf32>
    %cst_34 = arith.constant dense<0.000000e+00> : vector<16x32xf32>
    %78 = tpu.matmul %75, %77, %cst_34 {dimension_numbers = #tpu.dot_dimension_numbers<[1], [0], [0], [1], [0, 0, 1, 1], [], []>} : vector<16x8xf32>, vector<8x32xf32>, vector<16x32xf32> -> vector<16x32xf32>
    %79 = arith.addf %40, %78 : vector<16x32xf32>
    %80 = vector.extract_strided_slice %39 {offsets = [0, 8], sizes = [8, 8], strides = [1, 1]} : vector<16x96xf32> to vector<8x8xf32>
    %81 = vector.extract_strided_slice %39 {offsets = [0, 40], sizes = [8, 8], strides = [1, 1]} : vector<16x96xf32> to vector<8x8xf32>
    %82 = vector.extract_strided_slice %39 {offsets = [0, 72], sizes = [8, 8], strides = [1, 1]} : vector<16x96xf32> to vector<8x8xf32>
    %cst_35 = arith.constant dense<0.000000e+00> : vector<8x8xf32>
    %83 = tpu.matmul %80, %81, %cst_35 {dimension_numbers = #tpu.dot_dimension_numbers<[1], [1], [0], [0], [0, 0, 1, 0], [], []>} : vector<8x8xf32>, vector<8x8xf32>, vector<8x8xf32> -> vector<8x8xf32>
    %cst_36 = arith.constant dense<0xFF800000> : vector<8xf32>
    %84 = vector.multi_reduction <maximumf>, %83, %cst_36 [1] : vector<8x8xf32> to vector<8xf32>
    %85 = vector.shape_cast %84 : vector<8xf32> to vector<8x1xf32>
    %86 = vector.broadcast %85 : vector<8x1xf32> to vector<8x8xf32>
    %87 = arith.subf %83, %86 : vector<8x8xf32>
    %88 = math.exp %87 : vector<8x8xf32>
    %cst_37 = arith.constant dense<0.000000e+00> : vector<8xf32>
    %89 = vector.multi_reduction <add>, %88, %cst_37 [1] : vector<8x8xf32> to vector<8xf32>
    %90 = vector.shape_cast %89 : vector<8xf32> to vector<8x1xf32>
    %91 = tpu.reciprocal %90 : vector<8x1xf32> -> vector<8x1xf32>
    %92 = vector.broadcast %91 : vector<8x1xf32> to vector<8x8xf32>
    %93 = arith.mulf %88, %92 : vector<8x8xf32>
    %94 = arith.addf %57, %93 : vector<8x8xf32>
    %cst_38 = arith.constant dense<0.000000e+00> : vector<8x8xf32>
    %95 = tpu.matmul %93, %82, %cst_38 {dimension_numbers = #tpu.dot_dimension_numbers<[1], [0], [0], [1], [0, 0, 1, 1], [], []>} : vector<8x8xf32>, vector<8x8xf32>, vector<8x8xf32> -> vector<8x8xf32>
    %96 = vector.extract_strided_slice %39 {offsets = [8, 8], sizes = [8, 8], strides = [1, 1]} : vector<16x96xf32> to vector<8x8xf32>
    %97 = vector.extract_strided_slice %39 {offsets = [8, 40], sizes = [8, 8], strides = [1, 1]} : vector<16x96xf32> to vector<8x8xf32>
    %98 = vector.extract_strided_slice %39 {offsets = [8, 72], sizes = [8, 8], strides = [1, 1]} : vector<16x96xf32> to vector<8x8xf32>
    %cst_39 = arith.constant dense<0.000000e+00> : vector<8x8xf32>
    %99 = tpu.matmul %96, %97, %cst_39 {dimension_numbers = #tpu.dot_dimension_numbers<[1], [1], [0], [0], [0, 0, 1, 0], [], []>} : vector<8x8xf32>, vector<8x8xf32>, vector<8x8xf32> -> vector<8x8xf32>
    %cst_40 = arith.constant dense<0xFF800000> : vector<8xf32>
    %100 = vector.multi_reduction <maximumf>, %99, %cst_40 [1] : vector<8x8xf32> to vector<8xf32>
    %101 = vector.shape_cast %100 : vector<8xf32> to vector<8x1xf32>
    %102 = vector.broadcast %101 : vector<8x1xf32> to vector<8x8xf32>
    %103 = arith.subf %99, %102 : vector<8x8xf32>
    %104 = math.exp %103 : vector<8x8xf32>
    %cst_41 = arith.constant dense<0.000000e+00> : vector<8xf32>
    %105 = vector.multi_reduction <add>, %104, %cst_41 [1] : vector<8x8xf32> to vector<8xf32>
    %106 = vector.shape_cast %105 : vector<8xf32> to vector<8x1xf32>
    %107 = tpu.reciprocal %106 : vector<8x1xf32> -> vector<8x1xf32>
    %108 = vector.broadcast %107 : vector<8x1xf32> to vector<8x8xf32>
    %109 = arith.mulf %104, %108 : vector<8x8xf32>
    %110 = arith.addf %73, %109 : vector<8x8xf32>
    %cst_42 = arith.constant dense<0.000000e+00> : vector<8x8xf32>
    %111 = tpu.matmul %109, %98, %cst_42 {dimension_numbers = #tpu.dot_dimension_numbers<[1], [0], [0], [1], [0, 0, 1, 1], [], []>} : vector<8x8xf32>, vector<8x8xf32>, vector<8x8xf32> -> vector<8x8xf32>
    %112 = tpu.concatenate %95, %111 in 0 : vector<8x8xf32>, vector<8x8xf32> -> vector<16x8xf32>
    %c1_43 = arith.constant 1 : index
    %c0_44 = arith.constant 0 : index
    %c0_45 = arith.constant 0 : index
    %113 = vector.load %arg3[%c1_43, %c0_44, %c0_45] : memref<4x8x32xf32, #tpu.memory_space<vmem>>, vector<1x8x32xf32>
    %114 = vector.shape_cast %113 : vector<1x8x32xf32> to vector<8x32xf32>
    %cst_46 = arith.constant dense<0.000000e+00> : vector<16x32xf32>
    %115 = tpu.matmul %112, %114, %cst_46 {dimension_numbers = #tpu.dot_dimension_numbers<[1], [0], [0], [1], [0, 0, 1, 1], [], []>} : vector<16x8xf32>, vector<8x32xf32>, vector<16x32xf32> -> vector<16x32xf32>
    %116 = arith.addf %79, %115 : vector<16x32xf32>
    %117 = vector.extract_strided_slice %39 {offsets = [0, 16], sizes = [8, 8], strides = [1, 1]} : vector<16x96xf32> to vector<8x8xf32>
    %118 = vector.extract_strided_slice %39 {offsets = [0, 48], sizes = [8, 8], strides = [1, 1]} : vector<16x96xf32> to vector<8x8xf32>
    %119 = vector.extract_strided_slice %39 {offsets = [0, 80], sizes = [8, 8], strides = [1, 1]} : vector<16x96xf32> to vector<8x8xf32>
    %cst_47 = arith.constant dense<0.000000e+00> : vector<8x8xf32>
    %120 = tpu.matmul %117, %118, %cst_47 {dimension_numbers = #tpu.dot_dimension_numbers<[1], [1], [0], [0], [0, 0, 1, 0], [], []>} : vector<8x8xf32>, vector<8x8xf32>, vector<8x8xf32> -> vector<8x8xf32>
    %cst_48 = arith.constant dense<0xFF800000> : vector<8xf32>
    %121 = vector.multi_reduction <maximumf>, %120, %cst_48 [1] : vector<8x8xf32> to vector<8xf32>
    %122 = vector.shape_cast %121 : vector<8xf32> to vector<8x1xf32>
    %123 = vector.broadcast %122 : vector<8x1xf32> to vector<8x8xf32>
    %124 = arith.subf %120, %123 : vector<8x8xf32>
    %125 = math.exp %124 : vector<8x8xf32>
    %cst_49 = arith.constant dense<0.000000e+00> : vector<8xf32>
    %126 = vector.multi_reduction <add>, %125, %cst_49 [1] : vector<8x8xf32> to vector<8xf32>
    %127 = vector.shape_cast %126 : vector<8xf32> to vector<8x1xf32>
    %128 = tpu.reciprocal %127 : vector<8x1xf32> -> vector<8x1xf32>
    %129 = vector.broadcast %128 : vector<8x1xf32> to vector<8x8xf32>
    %130 = arith.mulf %125, %129 : vector<8x8xf32>
    %131 = arith.addf %94, %130 : vector<8x8xf32>
    %cst_50 = arith.constant dense<0.000000e+00> : vector<8x8xf32>
    %132 = tpu.matmul %130, %119, %cst_50 {dimension_numbers = #tpu.dot_dimension_numbers<[1], [0], [0], [1], [0, 0, 1, 1], [], []>} : vector<8x8xf32>, vector<8x8xf32>, vector<8x8xf32> -> vector<8x8xf32>
    %133 = vector.extract_strided_slice %39 {offsets = [8, 16], sizes = [8, 8], strides = [1, 1]} : vector<16x96xf32> to vector<8x8xf32>
    %134 = vector.extract_strided_slice %39 {offsets = [8, 48], sizes = [8, 8], strides = [1, 1]} : vector<16x96xf32> to vector<8x8xf32>
    %135 = vector.extract_strided_slice %39 {offsets = [8, 80], sizes = [8, 8], strides = [1, 1]} : vector<16x96xf32> to vector<8x8xf32>
    %cst_51 = arith.constant dense<0.000000e+00> : vector<8x8xf32>
    %136 = tpu.matmul %133, %134, %cst_51 {dimension_numbers = #tpu.dot_dimension_numbers<[1], [1], [0], [0], [0, 0, 1, 0], [], []>} : vector<8x8xf32>, vector<8x8xf32>, vector<8x8xf32> -> vector<8x8xf32>
    %cst_52 = arith.constant dense<0xFF800000> : vector<8xf32>
    %137 = vector.multi_reduction <maximumf>, %136, %cst_52 [1] : vector<8x8xf32> to vector<8xf32>
    %138 = vector.shape_cast %137 : vector<8xf32> to vector<8x1xf32>
    %139 = vector.broadcast %138 : vector<8x1xf32> to vector<8x8xf32>
    %140 = arith.subf %136, %139 : vector<8x8xf32>
    %141 = math.exp %140 : vector<8x8xf32>
    %cst_53 = arith.constant dense<0.000000e+00> : vector<8xf32>
    %142 = vector.multi_reduction <add>, %141, %cst_53 [1] : vector<8x8xf32> to vector<8xf32>
    %143 = vector.shape_cast %142 : vector<8xf32> to vector<8x1xf32>
    %144 = tpu.reciprocal %143 : vector<8x1xf32> -> vector<8x1xf32>
    %145 = vector.broadcast %144 : vector<8x1xf32> to vector<8x8xf32>
    %146 = arith.mulf %141, %145 : vector<8x8xf32>
    %147 = arith.addf %110, %146 : vector<8x8xf32>
    %cst_54 = arith.constant dense<0.000000e+00> : vector<8x8xf32>
    %148 = tpu.matmul %146, %135, %cst_54 {dimension_numbers = #tpu.dot_dimension_numbers<[1], [0], [0], [1], [0, 0, 1, 1], [], []>} : vector<8x8xf32>, vector<8x8xf32>, vector<8x8xf32> -> vector<8x8xf32>
    %149 = tpu.concatenate %132, %148 in 0 : vector<8x8xf32>, vector<8x8xf32> -> vector<16x8xf32>
    %c2_55 = arith.constant 2 : index
    %c0_56 = arith.constant 0 : index
    %c0_57 = arith.constant 0 : index
    %150 = vector.load %arg3[%c2_55, %c0_56, %c0_57] : memref<4x8x32xf32, #tpu.memory_space<vmem>>, vector<1x8x32xf32>
    %151 = vector.shape_cast %150 : vector<1x8x32xf32> to vector<8x32xf32>
    %cst_58 = arith.constant dense<0.000000e+00> : vector<16x32xf32>
    %152 = tpu.matmul %149, %151, %cst_58 {dimension_numbers = #tpu.dot_dimension_numbers<[1], [0], [0], [1], [0, 0, 1, 1], [], []>} : vector<16x8xf32>, vector<8x32xf32>, vector<16x32xf32> -> vector<16x32xf32>
    %153 = arith.addf %116, %152 : vector<16x32xf32>
    %154 = vector.extract_strided_slice %39 {offsets = [0, 24], sizes = [8, 8], strides = [1, 1]} : vector<16x96xf32> to vector<8x8xf32>
    %155 = vector.extract_strided_slice %39 {offsets = [0, 56], sizes = [8, 8], strides = [1, 1]} : vector<16x96xf32> to vector<8x8xf32>
    %156 = vector.extract_strided_slice %39 {offsets = [0, 88], sizes = [8, 8], strides = [1, 1]} : vector<16x96xf32> to vector<8x8xf32>
    %cst_59 = arith.constant dense<0.000000e+00> : vector<8x8xf32>
    %157 = tpu.matmul %154, %155, %cst_59 {dimension_numbers = #tpu.dot_dimension_numbers<[1], [1], [0], [0], [0, 0, 1, 0], [], []>} : vector<8x8xf32>, vector<8x8xf32>, vector<8x8xf32> -> vector<8x8xf32>
    %cst_60 = arith.constant dense<0xFF800000> : vector<8xf32>
    %158 = vector.multi_reduction <maximumf>, %157, %cst_60 [1] : vector<8x8xf32> to vector<8xf32>
    %159 = vector.shape_cast %158 : vector<8xf32> to vector<8x1xf32>
    %160 = vector.broadcast %159 : vector<8x1xf32> to vector<8x8xf32>
    %161 = arith.subf %157, %160 : vector<8x8xf32>
    %162 = math.exp %161 : vector<8x8xf32>
    %cst_61 = arith.constant dense<0.000000e+00> : vector<8xf32>
    %163 = vector.multi_reduction <add>, %162, %cst_61 [1] : vector<8x8xf32> to vector<8xf32>
    %164 = vector.shape_cast %163 : vector<8xf32> to vector<8x1xf32>
    %165 = tpu.reciprocal %164 : vector<8x1xf32> -> vector<8x1xf32>
    %166 = vector.broadcast %165 : vector<8x1xf32> to vector<8x8xf32>
    %167 = arith.mulf %162, %166 : vector<8x8xf32>
    %168 = arith.addf %131, %167 : vector<8x8xf32>
    %cst_62 = arith.constant dense<0.000000e+00> : vector<8x8xf32>
    %169 = tpu.matmul %167, %156, %cst_62 {dimension_numbers = #tpu.dot_dimension_numbers<[1], [0], [0], [1], [0, 0, 1, 1], [], []>} : vector<8x8xf32>, vector<8x8xf32>, vector<8x8xf32> -> vector<8x8xf32>
    %170 = vector.extract_strided_slice %39 {offsets = [8, 24], sizes = [8, 8], strides = [1, 1]} : vector<16x96xf32> to vector<8x8xf32>
    %171 = vector.extract_strided_slice %39 {offsets = [8, 56], sizes = [8, 8], strides = [1, 1]} : vector<16x96xf32> to vector<8x8xf32>
    %172 = vector.extract_strided_slice %39 {offsets = [8, 88], sizes = [8, 8], strides = [1, 1]} : vector<16x96xf32> to vector<8x8xf32>
    %cst_63 = arith.constant dense<0.000000e+00> : vector<8x8xf32>
    %173 = tpu.matmul %170, %171, %cst_63 {dimension_numbers = #tpu.dot_dimension_numbers<[1], [1], [0], [0], [0, 0, 1, 0], [], []>} : vector<8x8xf32>, vector<8x8xf32>, vector<8x8xf32> -> vector<8x8xf32>
    %cst_64 = arith.constant dense<0xFF800000> : vector<8xf32>
    %174 = vector.multi_reduction <maximumf>, %173, %cst_64 [1] : vector<8x8xf32> to vector<8xf32>
    %175 = vector.shape_cast %174 : vector<8xf32> to vector<8x1xf32>
    %176 = vector.broadcast %175 : vector<8x1xf32> to vector<8x8xf32>
    %177 = arith.subf %173, %176 : vector<8x8xf32>
    %178 = math.exp %177 : vector<8x8xf32>
    %cst_65 = arith.constant dense<0.000000e+00> : vector<8xf32>
    %179 = vector.multi_reduction <add>, %178, %cst_65 [1] : vector<8x8xf32> to vector<8xf32>
    %180 = vector.shape_cast %179 : vector<8xf32> to vector<8x1xf32>
    %181 = tpu.reciprocal %180 : vector<8x1xf32> -> vector<8x1xf32>
    %182 = vector.broadcast %181 : vector<8x1xf32> to vector<8x8xf32>
    %183 = arith.mulf %178, %182 : vector<8x8xf32>
    %184 = arith.addf %147, %183 : vector<8x8xf32>
    %cst_66 = arith.constant dense<0.000000e+00> : vector<8x8xf32>
    %185 = tpu.matmul %183, %172, %cst_66 {dimension_numbers = #tpu.dot_dimension_numbers<[1], [0], [0], [1], [0, 0, 1, 1], [], []>} : vector<8x8xf32>, vector<8x8xf32>, vector<8x8xf32> -> vector<8x8xf32>
    %186 = tpu.concatenate %169, %185 in 0 : vector<8x8xf32>, vector<8x8xf32> -> vector<16x8xf32>
    %c3_67 = arith.constant 3 : index
    %c0_68 = arith.constant 0 : index
    %c0_69 = arith.constant 0 : index
    %187 = vector.load %arg3[%c3_67, %c0_68, %c0_69] : memref<4x8x32xf32, #tpu.memory_space<vmem>>, vector<1x8x32xf32>
    %188 = vector.shape_cast %187 : vector<1x8x32xf32> to vector<8x32xf32>
    %cst_70 = arith.constant dense<0.000000e+00> : vector<16x32xf32>
    %189 = tpu.matmul %186, %188, %cst_70 {dimension_numbers = #tpu.dot_dimension_numbers<[1], [0], [0], [1], [0, 0, 1, 1], [], []>} : vector<16x8xf32>, vector<8x32xf32>, vector<16x32xf32> -> vector<16x32xf32>
    %190 = arith.addf %153, %189 : vector<16x32xf32>
    %c0_71 = arith.constant 0 : index
    %c0_72 = arith.constant 0 : index
    %191 = vector.load %arg4[%c0_71, %c0_72] : memref<1x32xf32, #tpu.memory_space<vmem>>, vector<1x32xf32>
    %192 = vector.broadcast %191 : vector<1x32xf32> to vector<16x32xf32>
    %193 = arith.addf %190, %192 : vector<16x32xf32>
    %194 = arith.addf %34, %193 : vector<16x32xf32>
    %cst_73 = arith.constant dense<0.000000e+00> : vector<16xf32>
    %195 = vector.multi_reduction <add>, %194, %cst_73 [1] : vector<16x32xf32> to vector<16xf32>
    %196 = vector.shape_cast %195 : vector<16xf32> to vector<16x1xf32>
    %cst_74 = arith.constant 3.200000e+01 : f32
    %197 = vector.broadcast %cst_74 : f32 to vector<16x1xf32>
    %198 = arith.divf %196, %197 : vector<16x1xf32>
    %199 = vector.broadcast %198 : vector<16x1xf32> to vector<16x32xf32>
    %200 = arith.subf %194, %199 : vector<16x32xf32>
    %201 = arith.mulf %200, %200 : vector<16x32xf32>
    %cst_75 = arith.constant dense<0.000000e+00> : vector<16xf32>
    %202 = vector.multi_reduction <add>, %201, %cst_75 [1] : vector<16x32xf32> to vector<16xf32>
    %203 = vector.shape_cast %202 : vector<16xf32> to vector<16x1xf32>
    %cst_76 = arith.constant 3.200000e+01 : f32
    %204 = vector.broadcast %cst_76 : f32 to vector<16x1xf32>
    %205 = arith.divf %203, %204 : vector<16x1xf32>
    %206 = vector.broadcast %198 : vector<16x1xf32> to vector<16x32xf32>
    %207 = arith.subf %194, %206 : vector<16x32xf32>
    %cst_77 = arith.constant 9.99999974E-6 : f32
    %208 = vector.broadcast %cst_77 : f32 to vector<16x1xf32>
    %209 = arith.addf %205, %208 : vector<16x1xf32>
    %210 = math.rsqrt %209 : vector<16x1xf32>
    %211 = vector.broadcast %210 : vector<16x1xf32> to vector<16x32xf32>
    %212 = arith.mulf %207, %211 : vector<16x32xf32>
    %c0_78 = arith.constant 0 : index
    %c0_79 = arith.constant 0 : index
    %213 = vector.load %arg5[%c0_78, %c0_79] : memref<1x32xf32, #tpu.memory_space<vmem>>, vector<1x32xf32>
    %214 = vector.broadcast %213 : vector<1x32xf32> to vector<16x32xf32>
    %215 = arith.mulf %212, %214 : vector<16x32xf32>
    %c0_80 = arith.constant 0 : index
    %c0_81 = arith.constant 0 : index
    %216 = vector.load %arg6[%c0_80, %c0_81] : memref<1x32xf32, #tpu.memory_space<vmem>>, vector<1x32xf32>
    %217 = vector.broadcast %216 : vector<1x32xf32> to vector<16x32xf32>
    %218 = arith.addf %215, %217 : vector<16x32xf32>
    %219 = vector.extract_strided_slice %218 {offsets = [0, 0], sizes = [1, 32], strides = [1, 1]} : vector<16x32xf32> to vector<1x32xf32>
    %220 = vector.extract_strided_slice %218 {offsets = [8, 0], sizes = [1, 32], strides = [1, 1]} : vector<16x32xf32> to vector<1x32xf32>
    %221 = tpu.concatenate %219, %220 in 0 : vector<1x32xf32>, vector<1x32xf32> -> vector<2x32xf32>
    %c0_82 = arith.constant 0 : index
    %c0_83 = arith.constant 0 : index
    %c0_84 = arith.constant 0 : index
    %222 = vector.load %arg7[%c0_82, %c0_83, %c0_84] : memref<8x2x32xf32, #tpu.memory_space<vmem>>, vector<1x2x32xf32>
    %223 = vector.shape_cast %222 : vector<1x2x32xf32> to vector<2x32xf32>
    %224 = vector.shape_cast %221 : vector<2x32xf32> to vector<1x2x32xf32>
    tpu.vector_store %arg7[%c0_82, %c0_83, %c0_84], %224 {strides = array<i32>} : memref<8x2x32xf32, #tpu.memory_space<vmem>>, vector<1x2x32xf32>,
    %225 = vector.extract_strided_slice %218 {offsets = [1, 0], sizes = [1, 32], strides = [1, 1]} : vector<16x32xf32> to vector<1x32xf32>
    %226 = vector.extract_strided_slice %218 {offsets = [9, 0], sizes = [1, 32], strides = [1, 1]} : vector<16x32xf32> to vector<1x32xf32>
    %227 = tpu.concatenate %225, %226 in 0 : vector<1x32xf32>, vector<1x32xf32> -> vector<2x32xf32>
    %c1_85 = arith.constant 1 : index
    %c0_86 = arith.constant 0 : index
    %c0_87 = arith.constant 0 : index
    %228 = vector.load %arg7[%c1_85, %c0_86, %c0_87] : memref<8x2x32xf32, #tpu.memory_space<vmem>>, vector<1x2x32xf32>
    %229 = vector.shape_cast %228 : vector<1x2x32xf32> to vector<2x32xf32>
    %230 = vector.shape_cast %227 : vector<2x32xf32> to vector<1x2x32xf32>
    tpu.vector_store %arg7[%c1_85, %c0_86, %c0_87], %230 {strides = array<i32>} : memref<8x2x32xf32, #tpu.memory_space<vmem>>, vector<1x2x32xf32>,
    %231 = vector.extract_strided_slice %218 {offsets = [2, 0], sizes = [1, 32], strides = [1, 1]} : vector<16x32xf32> to vector<1x32xf32>
    %232 = vector.extract_strided_slice %218 {offsets = [10, 0], sizes = [1, 32], strides = [1, 1]} : vector<16x32xf32> to vector<1x32xf32>
    %233 = tpu.concatenate %231, %232 in 0 : vector<1x32xf32>, vector<1x32xf32> -> vector<2x32xf32>
    %c2_88 = arith.constant 2 : index
    %c0_89 = arith.constant 0 : index
    %c0_90 = arith.constant 0 : index
    %234 = vector.load %arg7[%c2_88, %c0_89, %c0_90] : memref<8x2x32xf32, #tpu.memory_space<vmem>>, vector<1x2x32xf32>
    %235 = vector.shape_cast %234 : vector<1x2x32xf32> to vector<2x32xf32>
    %236 = vector.shape_cast %233 : vector<2x32xf32> to vector<1x2x32xf32>
    tpu.vector_store %arg7[%c2_88, %c0_89, %c0_90], %236 {strides = array<i32>} : memref<8x2x32xf32, #tpu.memory_space<vmem>>, vector<1x2x32xf32>,
    %237 = vector.extract_strided_slice %218 {offsets = [3, 0], sizes = [1, 32], strides = [1, 1]} : vector<16x32xf32> to vector<1x32xf32>
    %238 = vector.extract_strided_slice %218 {offsets = [11, 0], sizes = [1, 32], strides = [1, 1]} : vector<16x32xf32> to vector<1x32xf32>
    %239 = tpu.concatenate %237, %238 in 0 : vector<1x32xf32>, vector<1x32xf32> -> vector<2x32xf32>
    %c3_91 = arith.constant 3 : index
    %c0_92 = arith.constant 0 : index
    %c0_93 = arith.constant 0 : index
    %240 = vector.load %arg7[%c3_91, %c0_92, %c0_93] : memref<8x2x32xf32, #tpu.memory_space<vmem>>, vector<1x2x32xf32>
    %241 = vector.shape_cast %240 : vector<1x2x32xf32> to vector<2x32xf32>
    %242 = vector.shape_cast %239 : vector<2x32xf32> to vector<1x2x32xf32>
    tpu.vector_store %arg7[%c3_91, %c0_92, %c0_93], %242 {strides = array<i32>} : memref<8x2x32xf32, #tpu.memory_space<vmem>>, vector<1x2x32xf32>,
    %243 = vector.extract_strided_slice %218 {offsets = [4, 0], sizes = [1, 32], strides = [1, 1]} : vector<16x32xf32> to vector<1x32xf32>
    %244 = vector.extract_strided_slice %218 {offsets = [12, 0], sizes = [1, 32], strides = [1, 1]} : vector<16x32xf32> to vector<1x32xf32>
    %245 = tpu.concatenate %243, %244 in 0 : vector<1x32xf32>, vector<1x32xf32> -> vector<2x32xf32>
    %c4_94 = arith.constant 4 : index
    %c0_95 = arith.constant 0 : index
    %c0_96 = arith.constant 0 : index
    %246 = vector.load %arg7[%c4_94, %c0_95, %c0_96] : memref<8x2x32xf32, #tpu.memory_space<vmem>>, vector<1x2x32xf32>
    %247 = vector.shape_cast %246 : vector<1x2x32xf32> to vector<2x32xf32>
    %248 = vector.shape_cast %245 : vector<2x32xf32> to vector<1x2x32xf32>
    tpu.vector_store %arg7[%c4_94, %c0_95, %c0_96], %248 {strides = array<i32>} : memref<8x2x32xf32, #tpu.memory_space<vmem>>, vector<1x2x32xf32>,
    %249 = vector.extract_strided_slice %218 {offsets = [5, 0], sizes = [1, 32], strides = [1, 1]} : vector<16x32xf32> to vector<1x32xf32>
    %250 = vector.extract_strided_slice %218 {offsets = [13, 0], sizes = [1, 32], strides = [1, 1]} : vector<16x32xf32> to vector<1x32xf32>
    %251 = tpu.concatenate %249, %250 in 0 : vector<1x32xf32>, vector<1x32xf32> -> vector<2x32xf32>
    %c5_97 = arith.constant 5 : index
    %c0_98 = arith.constant 0 : index
    %c0_99 = arith.constant 0 : index
    %252 = vector.load %arg7[%c5_97, %c0_98, %c0_99] : memref<8x2x32xf32, #tpu.memory_space<vmem>>, vector<1x2x32xf32>
    %253 = vector.shape_cast %252 : vector<1x2x32xf32> to vector<2x32xf32>
    %254 = vector.shape_cast %251 : vector<2x32xf32> to vector<1x2x32xf32>
    tpu.vector_store %arg7[%c5_97, %c0_98, %c0_99], %254 {strides = array<i32>} : memref<8x2x32xf32, #tpu.memory_space<vmem>>, vector<1x2x32xf32>,
    %255 = vector.extract_strided_slice %218 {offsets = [6, 0], sizes = [1, 32], strides = [1, 1]} : vector<16x32xf32> to vector<1x32xf32>
    %256 = vector.extract_strided_slice %218 {offsets = [14, 0], sizes = [1, 32], strides = [1, 1]} : vector<16x32xf32> to vector<1x32xf32>
    %257 = tpu.concatenate %255, %256 in 0 : vector<1x32xf32>, vector<1x32xf32> -> vector<2x32xf32>
    %c6_100 = arith.constant 6 : index
    %c0_101 = arith.constant 0 : index
    %c0_102 = arith.constant 0 : index
    %258 = vector.load %arg7[%c6_100, %c0_101, %c0_102] : memref<8x2x32xf32, #tpu.memory_space<vmem>>, vector<1x2x32xf32>
    %259 = vector.shape_cast %258 : vector<1x2x32xf32> to vector<2x32xf32>
    %260 = vector.shape_cast %257 : vector<2x32xf32> to vector<1x2x32xf32>
    tpu.vector_store %arg7[%c6_100, %c0_101, %c0_102], %260 {strides = array<i32>} : memref<8x2x32xf32, #tpu.memory_space<vmem>>, vector<1x2x32xf32>,
    %261 = vector.extract_strided_slice %218 {offsets = [7, 0], sizes = [1, 32], strides = [1, 1]} : vector<16x32xf32> to vector<1x32xf32>
    %262 = vector.extract_strided_slice %218 {offsets = [15, 0], sizes = [1, 32], strides = [1, 1]} : vector<16x32xf32> to vector<1x32xf32>
    %263 = tpu.concatenate %261, %262 in 0 : vector<1x32xf32>, vector<1x32xf32> -> vector<2x32xf32>
    %c7_103 = arith.constant 7 : index
    %c0_104 = arith.constant 0 : index
    %c0_105 = arith.constant 0 : index
    %264 = vector.load %arg7[%c7_103, %c0_104, %c0_105] : memref<8x2x32xf32, #tpu.memory_space<vmem>>, vector<1x2x32xf32>
    %265 = vector.shape_cast %264 : vector<1x2x32xf32> to vector<2x32xf32>
    %266 = vector.shape_cast %263 : vector<2x32xf32> to vector<1x2x32xf32>
    tpu.vector_store %arg7[%c7_103, %c0_104, %c0_105], %266 {strides = array<i32>} : memref<8x2x32xf32, #tpu.memory_space<vmem>>, vector<1x2x32xf32>,
    %cst_106 = arith.constant 2.500000e-01 : f32
    %267 = vector.broadcast %cst_106 : f32 to vector<8x8xf32>
    %268 = arith.mulf %168, %267 : vector<8x8xf32>
    %c0_107 = arith.constant 0 : index
    %c0_108 = arith.constant 0 : index
    %c0_109 = arith.constant 0 : index
    %269 = vector.load %arg8[%c0_107, %c0_108, %c0_109] : memref<2x8x8xf32, #tpu.memory_space<vmem>>, vector<1x8x8xf32>
    %270 = vector.shape_cast %269 : vector<1x8x8xf32> to vector<8x8xf32>
    %271 = vector.shape_cast %268 : vector<8x8xf32> to vector<1x8x8xf32>
    tpu.vector_store %arg8[%c0_107, %c0_108, %c0_109], %271 {strides = array<i32>} : memref<2x8x8xf32, #tpu.memory_space<vmem>>, vector<1x8x8xf32>,
    %cst_110 = arith.constant 2.500000e-01 : f32
    %272 = vector.broadcast %cst_110 : f32 to vector<8x8xf32>
    %273 = arith.mulf %184, %272 : vector<8x8xf32>
    %c1_111 = arith.constant 1 : index
    %c0_112 = arith.constant 0 : index
    %c0_113 = arith.constant 0 : index
    %274 = vector.load %arg8[%c1_111, %c0_112, %c0_113] : memref<2x8x8xf32, #tpu.memory_space<vmem>>, vector<1x8x8xf32>
    %275 = vector.shape_cast %274 : vector<1x8x8xf32> to vector<8x8xf32>
    %276 = vector.shape_cast %273 : vector<8x8xf32> to vector<1x8x8xf32>
    tpu.vector_store %arg8[%c1_111, %c0_112, %c0_113], %276 {strides = array<i32>} : memref<2x8x8xf32, #tpu.memory_space<vmem>>, vector<1x8x8xf32>,
    return
  }
}

</mosaic_0001>

<llo_original>
// kernel: feature_attention.1
$region0: #{feature_attention.1}
  #allocation0 [shape = 'u32[]', space=smem, size = 0x4, offset = 0x4, fixed_abs, tag = 'smem constant byte address 0x4 - core index']
  #allocation1 [shape = 'u32[72,128]{1,0:T(1,128)}', space=vmem, size = 0x9000, scoped, tag = 'internal scratch']
  %s0 = inlined_call_operand.vmem [shape: f32[8,2,32], index: 0, kind: input, shape index: {}]
  %s1 = inlined_call_operand.vmem [shape: f32[32,96], index: 1, kind: input, shape index: {}]
  %s2 = inlined_call_operand.vmem [shape: f32[1,96], index: 2, kind: input, shape index: {}]
  %s3 = inlined_call_operand.vmem [shape: f32[4,8,32], index: 3, kind: input, shape index: {}]
  %s4 = inlined_call_operand.vmem [shape: f32[1,32], index: 4, kind: input, shape index: {}]
  %s5 = inlined_call_operand.vmem [shape: f32[1,32], index: 5, kind: input, shape index: {}]
  %s6 = inlined_call_operand.vmem [shape: f32[1,32], index: 6, kind: input, shape index: {}]
  %s7 = inlined_call_operand.hbm [shape: f32[8,2,32], index: 7, kind: output, shape index: {0}]
  %s8 = inlined_call_operand.hbm [shape: f32[2,8,8], index: 8, kind: output, shape index: {1}]
  %9 = xla_tuple %s7, %s8
  %s10 = sld [smem:[#allocation0]]
  $region46: #{feature_attention.1} parent=0
    _
  %s12 = ssub.s32 1, %s10
  %s13 = scalar_select 0, %s12, %s10
  $region1: #{feature_attention.1} parent=0
    #allocation2 [shape = 'u8[8192]{0}', space=vmem, size = 0x2000, scoped, tag = 'output window, operand 0, single buffered']
    #allocation3 [shape = 's32[1]{0}', space=sflag, size = 0x4, scoped, tag = 'scoped memory for feature_attention.1']
    #allocation4 [shape = 'u8[8192]{0}', space=vmem, size = 0x2000, scoped, tag = 'output window, operand 1, single buffered']
    #allocation5 [shape = 's32[1]{0}', space=sflag, size = 0x4, scoped, tag = 'scoped memory for feature_attention.1']
    %14 = vsyncpa [#allocation3], 0
    %15 = vsyncpa [#allocation5], 0
    // Predicated region
    $region2: #{feature_attention.1} parent=1 // pred_check
      _
    $region3: #{feature_attention.1} parent=1 // pred_check_branch
      %17 = sbr.rel (0) target = $region5
    $region4: #{feature_attention.1} parent=1 // pred_region
      _
    $region5: #{feature_attention.1} parent=1 // pred_fallthru
      _
    // Predicated region
    $region6: #{feature_attention.1} parent=1 // pred_check
      _
    $region7: #{feature_attention.1} parent=1 // pred_check_branch
      %19 = sbr.rel (0) target = $region9
    $region8: #{feature_attention.1} parent=1 // pred_region
      _
    $region9: #{feature_attention.1} parent=1 // pred_fallthru
      _
    // Predicated region
    $region10: #{feature_attention.1} parent=1 // pred_check
      _
    $region11: #{feature_attention.1} parent=1 // pred_check_branch
      %21 = sbr.rel (0) target = $region13
    $region12: #{feature_attention.1} parent=1 // pred_region
      _
    $region13: #{feature_attention.1} parent=1 // pred_fallthru
      _
    // Predicated region
    $region14: #{feature_attention.1} parent=1 // pred_check
      _
    $region15: #{feature_attention.1} parent=1 // pred_check_branch
      %23 = sbr.rel (0) target = $region17
    $region16: #{feature_attention.1} parent=1 // pred_region
      _
    $region17: #{feature_attention.1} parent=1 // pred_fallthru
      _
    // Predicated region
    $region18: #{feature_attention.1} parent=1 // pred_check
      _
    $region19: #{feature_attention.1} parent=1 // pred_check_branch
      %25 = sbr.rel (0) target = $region21
    $region20: #{feature_attention.1} parent=1 // pred_region
      _
    $region21: #{feature_attention.1} parent=1 // pred_fallthru
      _
    // Predicated region
    $region22: #{feature_attention.1} parent=1 // pred_check
      _
    $region23: #{feature_attention.1} parent=1 // pred_check_branch
      %27 = sbr.rel (0) target = $region25
    $region24: #{feature_attention.1} parent=1 // pred_region
      _
    $region25: #{feature_attention.1} parent=1 // pred_fallthru
      _
    // Predicated region
    $region26: #{feature_attention.1} parent=1 // pred_check
      _
    $region27: #{feature_attention.1} parent=1 // pred_check_branch
      %29 = sbr.rel (0) target = $region29
    $region28: #{feature_attention.1} parent=1 // pred_region
      _
    $region29: #{feature_attention.1} parent=1 // pred_fallthru
      _
    %v30 = vld [vmem:[%s0] sm:$0x3]
    %s31 = scalar_lea.vmem %s0, 2
    %v32 = vld [vmem:[%s31] sm:$0x3]
    %s33 = scalar_lea.vmem %s0, 4
    %v34 = vld [vmem:[%s33] sm:$0x3]
    %s35 = scalar_lea.vmem %s0, 6
    %v36 = vld [vmem:[%s35] sm:$0x3]
    %s37 = scalar_lea.vmem %s0, 8
    %v38 = vld [vmem:[%s37] sm:$0x3]
    %s39 = scalar_lea.vmem %s0, 10
    %v40 = vld [vmem:[%s39] sm:$0x3]
    %s41 = scalar_lea.vmem %s0, 12
    %v42 = vld [vmem:[%s41] sm:$0x3]
    %s43 = scalar_lea.vmem %s0, 14
    %v44 = vld [vmem:[%s43] sm:$0x3]
    %v46 = vrot.slane %v32, 7
    %v49 = vrot.slane %v34, 6
    %v52 = vrot.slane %v36, 5
    %v55 = vrot.slane %v38, 4
    %v58 = vrot.slane %v40, 3
    %v61 = vrot.slane %v42, 2
    %v64 = vrot.slane %v44, 1
    %vm66 = vcmask 1040384
    %v67 = vsel %vm66, %v30, %v46
    %vm68 = vcmask 1041408
    %v69 = vsel %vm68, %v67, %v49
    %vm70 = vcmask 1042432
    %v71 = vsel %vm70, %v69, %v52
    %vm72 = vcmask 1043456
    %v73 = vsel %vm72, %v71, %v55
    %vm74 = vcmask 1044480
    %v75 = vsel %vm74, %v73, %v58
    %vm76 = vcmask 1045504
    %v77 = vsel %vm76, %v75, %v61
    %vm78 = vcmask 1046528
    %v79 = vsel %vm78, %v77, %v64
    %v81 = vrot.slane %v30, 1
    %v83 = vrot.slane %v34, 7
    %v85 = vrot.slane %v36, 6
    %v87 = vrot.slane %v38, 5
    %v89 = vrot.slane %v40, 4
    %v91 = vrot.slane %v42, 3
    %v93 = vrot.slane %v44, 2
    %v95 = vsel %vm66, %v81, %v32
    %v96 = vsel %vm68, %v95, %v83
    %v97 = vsel %vm70, %v96, %v85
    %v98 = vsel %vm72, %v97, %v87
    %v99 = vsel %vm74, %v98, %v89
    %v100 = vsel %vm76, %v99, %v91
    %v101 = vsel %vm78, %v100, %v93
    %v102 = vld [vmem:[%s1] sm:$0xff]
    %v103 = vld [vmem:[%s1 + $0x8] sm:$0xff]
    %v104 = vld [vmem:[%s1 + $0x10] sm:$0xff]
    %v105 = vld [vmem:[%s1 + $0x18] sm:$0xff]
    %v106 = vld [vmem:[%s2] sm:$0x1]
    %v108 = vperm.slane %v106, 0
    %vm110 = vcmask 261120
    %v112 = vsel %vm110, %v79, 0
    %v115 = vsel %vm110, %v101, 0
    %117 = vmatpush.msra.mxu0 0.0
    %118 = vmatpush.msra.mxu0 0.0
    %119 = vmatpush.msra.mxu0 0.0
    %120 = vmatpush.msra.mxu0 0.0
    %121 = vmatpush.msra.mxu0 0.0
    %122 = vmatpush.msra.mxu0 0.0
    %123 = vmatpush.msra.mxu0 0.0
    %124 = vmatpush.msra.mxu0 0.0
    %125 = vmatpush.msra.mxu0 0.0
    %126 = vmatpush.msra.mxu0 0.0
    %127 = vmatpush.msra.mxu0 0.0
    %128 = vmatpush.msra.mxu0 0.0
    %129 = vmatpush.msra.mxu0 %v105
    %130 = vmatpush.msra.mxu0 %v104
    %131 = vmatpush.msra.mxu0 %v103
    %132 = vmatpush.msra.mxu0 %v102
    %133 = vmatmul.f32.gmra.mxu0 %v112
    %v134 = vpop.f32.mrf.mxu0
    %v135 = vadd.f32 %v108, %v134
    %136 = vmatmul.f32.gmra.mxu0 %v115
    %v137 = vpop.f32.mrf.mxu0
    %v138 = vadd.f32 %v108, %v137
    %139 = vdwg.mxu0
    %141 = vrot.lane.b32.xlu0 %v135, 96
    %v142 = vpop.permute.xlu0 %141
    %vm143 = vcmask 64512
    %v144 = vsel %vm143, %v135, 0
    %v146 = vsel %vm143, %v142, 0
    %148 = vmatpush.xpose.msra.mxu0 0.0
    %149 = vmatpush.xpose.msra.mxu0 0.0
    %150 = vmatpush.xpose.msra.mxu0 0.0
    %151 = vmatpush.xpose.msra.mxu0 0.0
    %152 = vmatpush.xpose.msra.mxu0 0.0
    %153 = vmatpush.xpose.msra.mxu0 0.0
    %154 = vmatpush.xpose.msra.mxu0 0.0
    %155 = vmatpush.xpose.msra.mxu0 0.0
    %156 = vmatpush.xpose.msra.mxu0 0.0
    %157 = vmatpush.xpose.msra.mxu0 0.0
    %158 = vmatpush.xpose.msra.mxu0 0.0
    %159 = vmatpush.xpose.msra.mxu0 0.0
    %160 = vmatpush.xpose.msra.mxu0 0.0
    %161 = vmatpush.xpose.msra.mxu0 0.0
    %162 = vmatpush.xpose.msra.mxu0 0.0
    %163 = vmatpush.xpose.msra.mxu0 %v146
    %164 = vmatmul.f32.gmra.mxu0 %v144
    %v165 = vpop.f32.mrf.mxu0
    %v166 = vadd.f32 0.0, %v165
    %167 = vdwg.mxu0
    %v168 = vsel %vm143, %v166, -inf
    %169 = vmax.xlane.f32.xlu0 %v168
    %v170 = vpop.xlane.xlu0 %169
    %v171 = vsub.f32 %v166, %v170
    %v172 = vmul.f32 %v171, 1.442695
    %v173 = vpow.pop %v172
    %v174 = vsel %vm143, %v173, 0.0
    %175 = vadd.xlane.f32.xlu0 %v174
    %v176 = vpop.xlane.xlu0 %175
    %v177 = vrcp.pop %v176
    %v178 = vmul.f32 %v176, %v177
    %v179 = vsub.f32 1.0, %v178
    %v180 = vmul.f32 %v177, %v179
    %v181 = vadd.f32 %v177, %v180
    %vm182 = vweird.f32 %v176
    %vm183 = vweird.f32 %v177
    %vm184 = vmor %vm182, %vm183
    %v185 = vsel %vm184, %v177, %v181
    %v186 = vand.u32 2147483647, %v176
    %vm187 = vcmp.eq.f32.partialorder %v186, 8.507059e+37
    %v188 = vand.u32 %v176, 2147483648
    %v189 = vor.u32 1.1754944e-38, %v188
    %v190 = vsel %vm187, %v189, %v185
    %v191 = vmul.f32 %v173, %v190
    %v192 = vadd.f32 %v191, 0.0
    %193 = vrot.lane.b32.xlu0 %v135, 64
    %v194 = vpop.permute.xlu0 %193
    %v197 = vsel %vm143, %v191, 0
    %199 = vmatpush.msra.mxu0 0.0
    %200 = vmatpush.msra.mxu0 0.0
    %201 = vmatpush.msra.mxu0 0.0
    %202 = vmatpush.msra.mxu0 0.0
    %203 = vmatpush.msra.mxu0 0.0
    %204 = vmatpush.msra.mxu0 0.0
    %205 = vmatpush.msra.mxu0 0.0
    %206 = vmatpush.msra.mxu0 0.0
    %207 = vmatpush.msra.mxu0 0.0
    %208 = vmatpush.msra.mxu0 0.0
    %209 = vmatpush.msra.mxu0 0.0
    %210 = vmatpush.msra.mxu0 0.0
    %211 = vmatpush.msra.mxu0 0.0
    %212 = vmatpush.msra.mxu0 0.0
    %213 = vmatpush.msra.mxu0 0.0
    %214 = vmatpush.msra.mxu0 %v194
    %215 = vmatmul.f32.gmra.mxu0 %v197
    %v216 = vpop.f32.mrf.mxu0
    %v217 = vadd.f32 0.0, %v216
    %218 = vdwg.mxu0
    %220 = vrot.lane.b32.xlu0 %v138, 96
    %v221 = vpop.permute.xlu0 %220
    %v222 = vsel %vm143, %v138, 0
    %v224 = vsel %vm143, %v221, 0
    %226 = vmatpush.xpose.msra.mxu0 0.0
    %227 = vmatpush.xpose.msra.mxu0 0.0
    %228 = vmatpush.xpose.msra.mxu0 0.0
    %229 = vmatpush.xpose.msra.mxu0 0.0
    %230 = vmatpush.xpose.msra.mxu0 0.0
    %231 = vmatpush.xpose.msra.mxu0 0.0
    %232 = vmatpush.xpose.msra.mxu0 0.0
    %233 = vmatpush.xpose.msra.mxu0 0.0
    %234 = vmatpush.xpose.msra.mxu0 0.0
    %235 = vmatpush.xpose.msra.mxu0 0.0
    %236 = vmatpush.xpose.msra.mxu0 0.0
    %237 = vmatpush.xpose.msra.mxu0 0.0
    %238 = vmatpush.xpose.msra.mxu0 0.0
    %239 = vmatpush.xpose.msra.mxu0 0.0
    %240 = vmatpush.xpose.msra.mxu0 0.0
    %241 = vmatpush.xpose.msra.mxu0 %v224
    %242 = vmatmul.f32.gmra.mxu0 %v222
    %v243 = vpop.f32.mrf.mxu0
    %v244 = vadd.f32 0.0, %v243
    %245 = vdwg.mxu0
    %v246 = vsel %vm143, %v244, -inf
    %247 = vmax.xlane.f32.xlu0 %v246
    %v248 = vpop.xlane.xlu0 %247
    %v249 = vsub.f32 %v244, %v248
    %v250 = vmul.f32 %v249, 1.442695
    %v251 = vpow.pop %v250
    %v252 = vsel %vm143, %v251, 0.0
    %253 = vadd.xlane.f32.xlu0 %v252
    %v254 = vpop.xlane.xlu0 %253
    %v255 = vrcp.pop %v254
    %v256 = vmul.f32 %v254, %v255
    %v257 = vsub.f32 1.0, %v256
    %v258 = vmul.f32 %v255, %v257
    %v259 = vadd.f32 %v255, %v258
    %vm260 = vweird.f32 %v254
    %vm261 = vweird.f32 %v255
    %vm262 = vmor %vm260, %vm261
    %v263 = vsel %vm262, %v255, %v259
    %v264 = vand.u32 2147483647, %v254
    %vm265 = vcmp.eq.f32.partialorder %v264, 8.507059e+37
    %v266 = vand.u32 %v254, 2147483648
    %v267 = vor.u32 1.1754944e-38, %v266
    %v268 = vsel %vm265, %v267, %v263
    %v269 = vmul.f32 %v251, %v268
    %v270 = vadd.f32 %v269, 0.0
    %271 = vrot.lane.b32.xlu0 %v138, 64
    %v272 = vpop.permute.xlu0 %271
    %v275 = vsel %vm143, %v269, 0
    %277 = vmatpush.msra.mxu0 0.0
    %278 = vmatpush.msra.mxu0 0.0
    %279 = vmatpush.msra.mxu0 0.0
    %280 = vmatpush.msra.mxu0 0.0
    %281 = vmatpush.msra.mxu0 0.0
    %282 = vmatpush.msra.mxu0 0.0
    %283 = vmatpush.msra.mxu0 0.0
    %284 = vmatpush.msra.mxu0 0.0
    %285 = vmatpush.msra.mxu0 0.0
    %286 = vmatpush.msra.mxu0 0.0
    %287 = vmatpush.msra.mxu0 0.0
    %288 = vmatpush.msra.mxu0 0.0
    %289 = vmatpush.msra.mxu0 0.0
    %290 = vmatpush.msra.mxu0 0.0
    %291 = vmatpush.msra.mxu0 0.0
    %292 = vmatpush.msra.mxu0 %v272
    %293 = vmatmul.f32.gmra.mxu0 %v275
    %v294 = vpop.f32.mrf.mxu0
    %v295 = vadd.f32 0.0, %v294
    %296 = vdwg.mxu0
    %v297 = vld [vmem:[%s3] sm:$0xff]
    %298 = vrot.lane.b32.xlu0 %v135, 120
    %v299 = vpop.permute.xlu0 %298
    %300 = vrot.lane.b32.xlu0 %v135, 88
    %v301 = vpop.permute.xlu0 %300
    %v302 = vsel %vm143, %v299, 0
    %v304 = vsel %vm143, %v301, 0
    %306 = vmatpush.xpose.msra.mxu0 0.0
    %307 = vmatpush.xpose.msra.mxu0 0.0
    %308 = vmatpush.xpose.msra.mxu0 0.0
    %309 = vmatpush.xpose.msra.mxu0 0.0
    %310 = vmatpush.xpose.msra.mxu0 0.0
    %311 = vmatpush.xpose.msra.mxu0 0.0
    %312 = vmatpush.xpose.msra.mxu0 0.0
    %313 = vmatpush.xpose.msra.mxu0 0.0
    %314 = vmatpush.xpose.msra.mxu0 0.0
    %315 = vmatpush.xpose.msra.mxu0 0.0
    %316 = vmatpush.xpose.msra.mxu0 0.0
    %317 = vmatpush.xpose.msra.mxu0 0.0
    %318 = vmatpush.xpose.msra.mxu0 0.0
    %319 = vmatpush.xpose.msra.mxu0 0.0
    %320 = vmatpush.xpose.msra.mxu0 0.0
    %321 = vmatpush.xpose.msra.mxu0 %v304
    %322 = vmatmul.f32.gmra.mxu0 %v302
    %v323 = vpop.f32.mrf.mxu0
    %v324 = vadd.f32 0.0, %v323
    %325 = vdwg.mxu0
    %v326 = vsel %vm143, %v324, -inf
    %327 = vmax.xlane.f32.xlu0 %v326
    %v328 = vpop.xlane.xlu0 %327
    %v329 = vsub.f32 %v324, %v328
    %v330 = vmul.f32 %v329, 1.442695
    %v331 = vpow.pop %v330
    %v332 = vsel %vm143, %v331, 0.0
    %333 = vadd.xlane.f32.xlu0 %v332
    %v334 = vpop.xlane.xlu0 %333
    %v335 = vrcp.pop %v334
    %v336 = vmul.f32 %v334, %v335
    %v337 = vsub.f32 1.0, %v336
    %v338 = vmul.f32 %v335, %v337
    %v339 = vadd.f32 %v335, %v338
    %vm340 = vweird.f32 %v334
    %vm341 = vweird.f32 %v335
    %vm342 = vmor %vm340, %vm341
    %v343 = vsel %vm342, %v335, %v339
    %v344 = vand.u32 2147483647, %v334
    %vm345 = vcmp.eq.f32.partialorder %v344, 8.507059e+37
    %v346 = vand.u32 %v334, 2147483648
    %v347 = vor.u32 1.1754944e-38, %v346
    %v348 = vsel %vm345, %v347, %v343
    %v349 = vmul.f32 %v331, %v348
    %v350 = vadd.f32 %v192, %v349
    %351 = vrot.lane.b32.xlu0 %v135, 56
    %v352 = vpop.permute.xlu0 %351
    %v355 = vsel %vm143, %v349, 0
    %357 = vmatpush.msra.mxu0 0.0
    %358 = vmatpush.msra.mxu0 0.0
    %359 = vmatpush.msra.mxu0 0.0
    %360 = vmatpush.msra.mxu0 0.0
    %361 = vmatpush.msra.mxu0 0.0
    %362 = vmatpush.msra.mxu0 0.0
    %363 = vmatpush.msra.mxu0 0.0
    %364 = vmatpush.msra.mxu0 0.0
    %365 = vmatpush.msra.mxu0 0.0
    %366 = vmatpush.msra.mxu0 0.0
    %367 = vmatpush.msra.mxu0 0.0
    %368 = vmatpush.msra.mxu0 0.0
    %369 = vmatpush.msra.mxu0 0.0
    %370 = vmatpush.msra.mxu0 0.0
    %371 = vmatpush.msra.mxu0 0.0
    %372 = vmatpush.msra.mxu0 %v352
    %373 = vmatmul.f32.gmra.mxu0 %v355
    %v374 = vpop.f32.mrf.mxu0
    %v375 = vadd.f32 0.0, %v374
    %376 = vdwg.mxu0
    %377 = vrot.lane.b32.xlu0 %v138, 120
    %v378 = vpop.permute.xlu0 %377
    %379 = vrot.lane.b32.xlu0 %v138, 88
    %v380 = vpop.permute.xlu0 %379
    %v381 = vsel %vm143, %v378, 0
    %v383 = vsel %vm143, %v380, 0
    %385 = vmatpush.xpose.msra.mxu0 0.0
    %386 = vmatpush.xpose.msra.mxu0 0.0
    %387 = vmatpush.xpose.msra.mxu0 0.0
    %388 = vmatpush.xpose.msra.mxu0 0.0
    %389 = vmatpush.xpose.msra.mxu0 0.0
    %390 = vmatpush.xpose.msra.mxu0 0.0
    %391 = vmatpush.xpose.msra.mxu0 0.0
    %392 = vmatpush.xpose.msra.mxu0 0.0
    %393 = vmatpush.xpose.msra.mxu0 0.0
    %394 = vmatpush.xpose.msra.mxu0 0.0
    %395 = vmatpush.xpose.msra.mxu0 0.0
    %396 = vmatpush.xpose.msra.mxu0 0.0
    %397 = vmatpush.xpose.msra.mxu0 0.0
    %398 = vmatpush.xpose.msra.mxu0 0.0
    %399 = vmatpush.xpose.msra.mxu0 0.0
    %400 = vmatpush.xpose.msra.mxu0 %v383
    %401 = vmatmul.f32.gmra.mxu0 %v381
    %v402 = vpop.f32.mrf.mxu0
    %v403 = vadd.f32 0.0, %v402
    %404 = vdwg.mxu0
    %v405 = vsel %vm143, %v403, -inf
    %406 = vmax.xlane.f32.xlu0 %v405
    %v407 = vpop.xlane.xlu0 %406
    %v408 = vsub.f32 %v403, %v407
    %v409 = vmul.f32 %v408, 1.442695
    %v410 = vpow.pop %v409
    %v411 = vsel %vm143, %v410, 0.0
    %412 = vadd.xlane.f32.xlu0 %v411
    %v413 = vpop.xlane.xlu0 %412
    %v414 = vrcp.pop %v413
    %v415 = vmul.f32 %v413, %v414
    %v416 = vsub.f32 1.0, %v415
    %v417 = vmul.f32 %v414, %v416
    %v418 = vadd.f32 %v414, %v417
    %vm419 = vweird.f32 %v413
    %vm420 = vweird.f32 %v414
    %vm421 = vmor %vm419, %vm420
    %v422 = vsel %vm421, %v414, %v418
    %v423 = vand.u32 2147483647, %v413
    %vm424 = vcmp.eq.f32.partialorder %v423, 8.507059e+37
    %v425 = vand.u32 %v413, 2147483648
    %v426 = vor.u32 1.1754944e-38, %v425
    %v427 = vsel %vm424, %v426, %v422
    %v428 = vmul.f32 %v410, %v427
    %v429 = vadd.f32 %v270, %v428
    %430 = vrot.lane.b32.xlu0 %v138, 56
    %v431 = vpop.permute.xlu0 %430
    %v434 = vsel %vm143, %v428, 0
    %436 = vmatpush.msra.mxu0 0.0
    %437 = vmatpush.msra.mxu0 0.0
    %438 = vmatpush.msra.mxu0 0.0
    %439 = vmatpush.msra.mxu0 0.0
    %440 = vmatpush.msra.mxu0 0.0
    %441 = vmatpush.msra.mxu0 0.0
    %442 = vmatpush.msra.mxu0 0.0
    %443 = vmatpush.msra.mxu0 0.0
    %444 = vmatpush.msra.mxu0 0.0
    %445 = vmatpush.msra.mxu0 0.0
    %446 = vmatpush.msra.mxu0 0.0
    %447 = vmatpush.msra.mxu0 0.0
    %448 = vmatpush.msra.mxu0 0.0
    %449 = vmatpush.msra.mxu0 0.0
    %450 = vmatpush.msra.mxu0 0.0
    %451 = vmatpush.msra.mxu0 %v431
    %452 = vmatmul.f32.gmra.mxu0 %v434
    %v453 = vpop.f32.mrf.mxu0
    %v454 = vadd.f32 0.0, %v453
    %455 = vdwg.mxu0
    %s456 = scalar_lea.vmem %s3, 8
    %v457 = vld [vmem:[%s456] sm:$0xff]
    %v459 = vsel %vm143, %v375, 0
    %v462 = vsel %vm143, %v454, 0
    %464 = vmatpush.msra.mxu0 0.0
    %465 = vmatpush.msra.mxu0 0.0
    %466 = vmatpush.msra.mxu0 0.0
    %467 = vmatpush.msra.mxu0 0.0
    %468 = vmatpush.msra.mxu0 0.0
    %469 = vmatpush.msra.mxu0 0.0
    %470 = vmatpush.msra.mxu0 0.0
    %471 = vmatpush.msra.mxu0 0.0
    %472 = vmatpush.msra.mxu0 0.0
    %473 = vmatpush.msra.mxu0 0.0
    %474 = vmatpush.msra.mxu0 0.0
    %475 = vmatpush.msra.mxu0 0.0
    %476 = vmatpush.msra.mxu0 0.0
    %477 = vmatpush.msra.mxu0 0.0
    %478 = vmatpush.msra.mxu0 0.0
    %479 = vmatpush.msra.mxu0 %v457
    %480 = vmatmul.f32.gmra.mxu0 %v459
    %v481 = vpop.f32.mrf.mxu0
    %v482 = vadd.f32 0.0, %v481
    %483 = vmatmul.f32.gmra.mxu0 %v462
    %v484 = vpop.f32.mrf.mxu0
    %v485 = vadd.f32 0.0, %v484
    %486 = vdwg.mxu0
    %v488 = vsel %vm143, %v217, 0
    %v491 = vsel %vm143, %v295, 0
    %493 = vmatpush.msra.mxu0 0.0
    %494 = vmatpush.msra.mxu0 0.0
    %495 = vmatpush.msra.mxu0 0.0
    %496 = vmatpush.msra.mxu0 0.0
    %497 = vmatpush.msra.mxu0 0.0
    %498 = vmatpush.msra.mxu0 0.0
    %499 = vmatpush.msra.mxu0 0.0
    %500 = vmatpush.msra.mxu0 0.0
    %501 = vmatpush.msra.mxu0 0.0
    %502 = vmatpush.msra.mxu0 0.0
    %503 = vmatpush.msra.mxu0 0.0
    %504 = vmatpush.msra.mxu0 0.0
    %505 = vmatpush.msra.mxu0 0.0
    %506 = vmatpush.msra.mxu0 0.0
    %507 = vmatpush.msra.mxu0 0.0
    %508 = vmatpush.msra.mxu0 %v297
    %509 = vmatmul.f32.gmra.mxu0 %v488
    %v510 = vpop.f32.mrf.mxu0
    %v511 = vadd.f32 %v482, %v510
    %512 = vmatmul.f32.gmra.mxu0 %v491
    %v513 = vpop.f32.mrf.mxu0
    %v514 = vadd.f32 %v485, %v513
    %515 = vdwg.mxu0
    %516 = vrot.lane.b32.xlu0 %v135, 112
    %v517 = vpop.permute.xlu0 %516
    %518 = vrot.lane.b32.xlu0 %v135, 80
    %v519 = vpop.permute.xlu0 %518
    %v520 = vsel %vm143, %v517, 0
    %v522 = vsel %vm143, %v519, 0
    %524 = vmatpush.xpose.msra.mxu0 0.0
    %525 = vmatpush.xpose.msra.mxu0 0.0
    %526 = vmatpush.xpose.msra.mxu0 0.0
    %527 = vmatpush.xpose.msra.mxu0 0.0
    %528 = vmatpush.xpose.msra.mxu0 0.0
    %529 = vmatpush.xpose.msra.mxu0 0.0
    %530 = vmatpush.xpose.msra.mxu0 0.0
    %531 = vmatpush.xpose.msra.mxu0 0.0
    %532 = vmatpush.xpose.msra.mxu0 0.0
    %533 = vmatpush.xpose.msra.mxu0 0.0
    %534 = vmatpush.xpose.msra.mxu0 0.0
    %535 = vmatpush.xpose.msra.mxu0 0.0
    %536 = vmatpush.xpose.msra.mxu0 0.0
    %537 = vmatpush.xpose.msra.mxu0 0.0
    %538 = vmatpush.xpose.msra.mxu0 0.0
    %539 = vmatpush.xpose.msra.mxu0 %v522
    %540 = vmatmul.f32.gmra.mxu0 %v520
    %v541 = vpop.f32.mrf.mxu0
    %v542 = vadd.f32 0.0, %v541
    %543 = vdwg.mxu0
    %v544 = vsel %vm143, %v542, -inf
    %545 = vmax.xlane.f32.xlu0 %v544
    %v546 = vpop.xlane.xlu0 %545
    %v547 = vsub.f32 %v542, %v546
    %v548 = vmul.f32 %v547, 1.442695
    %v549 = vpow.pop %v548
    %v550 = vsel %vm143, %v549, 0.0
    %551 = vadd.xlane.f32.xlu0 %v550
    %v552 = vpop.xlane.xlu0 %551
    %v553 = vrcp.pop %v552
    %v554 = vmul.f32 %v552, %v553
    %v555 = vsub.f32 1.0, %v554
    %v556 = vmul.f32 %v553, %v555
    %v557 = vadd.f32 %v553, %v556
    %vm558 = vweird.f32 %v552
    %vm559 = vweird.f32 %v553
    %vm560 = vmor %vm558, %vm559
    %v561 = vsel %vm560, %v553, %v557
    %v562 = vand.u32 2147483647, %v552
    %vm563 = vcmp.eq.f32.partialorder %v562, 8.507059e+37
    %v564 = vand.u32 %v552, 2147483648
    %v565 = vor.u32 1.1754944e-38, %v564
    %v566 = vsel %vm563, %v565, %v561
    %v567 = vmul.f32 %v549, %v566
    %v568 = vadd.f32 %v350, %v567
    %569 = vrot.lane.b32.xlu0 %v135, 48
    %v570 = vpop.permute.xlu0 %569
    %v573 = vsel %vm143, %v567, 0
    %575 = vmatpush.msra.mxu0 0.0
    %576 = vmatpush.msra.mxu0 0.0
    %577 = vmatpush.msra.mxu0 0.0
    %578 = vmatpush.msra.mxu0 0.0
    %579 = vmatpush.msra.mxu0 0.0
    %580 = vmatpush.msra.mxu0 0.0
    %581 = vmatpush.msra.mxu0 0.0
    %582 = vmatpush.msra.mxu0 0.0
    %583 = vmatpush.msra.mxu0 0.0
    %584 = vmatpush.msra.mxu0 0.0
    %585 = vmatpush.msra.mxu0 0.0
    %586 = vmatpush.msra.mxu0 0.0
    %587 = vmatpush.msra.mxu0 0.0
    %588 = vmatpush.msra.mxu0 0.0
    %589 = vmatpush.msra.mxu0 0.0
    %590 = vmatpush.msra.mxu0 %v570
    %591 = vmatmul.f32.gmra.mxu0 %v573
    %v592 = vpop.f32.mrf.mxu0
    %v593 = vadd.f32 0.0, %v592
    %594 = vdwg.mxu0
    %595 = vrot.lane.b32.xlu0 %v138, 112
    %v596 = vpop.permute.xlu0 %595
    %597 = vrot.lane.b32.xlu0 %v138, 80
    %v598 = vpop.permute.xlu0 %597
    %v599 = vsel %vm143, %v596, 0
    %v601 = vsel %vm143, %v598, 0
    %603 = vmatpush.xpose.msra.mxu0 0.0
    %604 = vmatpush.xpose.msra.mxu0 0.0
    %605 = vmatpush.xpose.msra.mxu0 0.0
    %606 = vmatpush.xpose.msra.mxu0 0.0
    %607 = vmatpush.xpose.msra.mxu0 0.0
    %608 = vmatpush.xpose.msra.mxu0 0.0
    %609 = vmatpush.xpose.msra.mxu0 0.0
    %610 = vmatpush.xpose.msra.mxu0 0.0
    %611 = vmatpush.xpose.msra.mxu0 0.0
    %612 = vmatpush.xpose.msra.mxu0 0.0
    %613 = vmatpush.xpose.msra.mxu0 0.0
    %614 = vmatpush.xpose.msra.mxu0 0.0
    %615 = vmatpush.xpose.msra.mxu0 0.0
    %616 = vmatpush.xpose.msra.mxu0 0.0
    %617 = vmatpush.xpose.msra.mxu0 0.0
    %618 = vmatpush.xpose.msra.mxu0 %v601
    %619 = vmatmul.f32.gmra.mxu0 %v599
    %v620 = vpop.f32.mrf.mxu0
    %v621 = vadd.f32 0.0, %v620
    %622 = vdwg.mxu0
    %v623 = vsel %vm143, %v621, -inf
    %624 = vmax.xlane.f32.xlu0 %v623
    %v625 = vpop.xlane.xlu0 %624
    %v626 = vsub.f32 %v621, %v625
    %v627 = vmul.f32 %v626, 1.442695
    %v628 = vpow.pop %v627
    %v629 = vsel %vm143, %v628, 0.0
    %630 = vadd.xlane.f32.xlu0 %v629
    %v631 = vpop.xlane.xlu0 %630
    %v632 = vrcp.pop %v631
    %v633 = vmul.f32 %v631, %v632
    %v634 = vsub.f32 1.0, %v633
    %v635 = vmul.f32 %v632, %v634
    %v636 = vadd.f32 %v632, %v635
    %vm637 = vweird.f32 %v631
    %vm638 = vweird.f32 %v632
    %vm639 = vmor %vm637, %vm638
    %v640 = vsel %vm639, %v632, %v636
    %v641 = vand.u32 2147483647, %v631
    %vm642 = vcmp.eq.f32.partialorder %v641, 8.507059e+37
    %v643 = vand.u32 %v631, 2147483648
    %v644 = vor.u32 1.1754944e-38, %v643
    %v645 = vsel %vm642, %v644, %v640
    %v646 = vmul.f32 %v628, %v645
    %v647 = vadd.f32 %v429, %v646
    %648 = vrot.lane.b32.xlu0 %v138, 48
    %v649 = vpop.permute.xlu0 %648
    %v652 = vsel %vm143, %v646, 0
    %654 = vmatpush.msra.mxu0 0.0
    %655 = vmatpush.msra.mxu0 0.0
    %656 = vmatpush.msra.mxu0 0.0
    %657 = vmatpush.msra.mxu0 0.0
    %658 = vmatpush.msra.mxu0 0.0
    %659 = vmatpush.msra.mxu0 0.0
    %660 = vmatpush.msra.mxu0 0.0
    %661 = vmatpush.msra.mxu0 0.0
    %662 = vmatpush.msra.mxu0 0.0
    %663 = vmatpush.msra.mxu0 0.0
    %664 = vmatpush.msra.mxu0 0.0
    %665 = vmatpush.msra.mxu0 0.0
    %666 = vmatpush.msra.mxu0 0.0
    %667 = vmatpush.msra.mxu0 0.0
    %668 = vmatpush.msra.mxu0 0.0
    %669 = vmatpush.msra.mxu0 %v649
    %670 = vmatmul.f32.gmra.mxu0 %v652
    %v671 = vpop.f32.mrf.mxu0
    %v672 = vadd.f32 0.0, %v671
    %673 = vdwg.mxu0
    %s674 = scalar_lea.vmem %s3, 16
    %v675 = vld [vmem:[%s674] sm:$0xff]
    %v677 = vsel %vm143, %v593, 0
    %v680 = vsel %vm143, %v672, 0
    %682 = vmatpush.msra.mxu0 0.0
    %683 = vmatpush.msra.mxu0 0.0
    %684 = vmatpush.msra.mxu0 0.0
    %685 = vmatpush.msra.mxu0 0.0
    %686 = vmatpush.msra.mxu0 0.0
    %687 = vmatpush.msra.mxu0 0.0
    %688 = vmatpush.msra.mxu0 0.0
    %689 = vmatpush.msra.mxu0 0.0
    %690 = vmatpush.msra.mxu0 0.0
    %691 = vmatpush.msra.mxu0 0.0
    %692 = vmatpush.msra.mxu0 0.0
    %693 = vmatpush.msra.mxu0 0.0
    %694 = vmatpush.msra.mxu0 0.0
    %695 = vmatpush.msra.mxu0 0.0
    %696 = vmatpush.msra.mxu0 0.0
    %697 = vmatpush.msra.mxu0 %v675
    %698 = vmatmul.f32.gmra.mxu0 %v677
    %v699 = vpop.f32.mrf.mxu0
    %v700 = vadd.f32 0.0, %v699
    %701 = vmatmul.f32.gmra.mxu0 %v680
    %v702 = vpop.f32.mrf.mxu0
    %v703 = vadd.f32 0.0, %v702
    %704 = vdwg.mxu0
    %v705 = vadd.f32 %v511, %v700
    %v706 = vadd.f32 %v514, %v703
    %707 = vrot.lane.b32.xlu0 %v135, 104
    %v708 = vpop.permute.xlu0 %707
    %709 = vrot.lane.b32.xlu0 %v135, 72
    %v710 = vpop.permute.xlu0 %709
    %v711 = vsel %vm143, %v708, 0
    %v713 = vsel %vm143, %v710, 0
    %715 = vmatpush.xpose.msra.mxu0 0.0
    %716 = vmatpush.xpose.msra.mxu0 0.0
    %717 = vmatpush.xpose.msra.mxu0 0.0
    %718 = vmatpush.xpose.msra.mxu0 0.0
    %719 = vmatpush.xpose.msra.mxu0 0.0
    %720 = vmatpush.xpose.msra.mxu0 0.0
    %721 = vmatpush.xpose.msra.mxu0 0.0
    %722 = vmatpush.xpose.msra.mxu0 0.0
    %723 = vmatpush.xpose.msra.mxu0 0.0
    %724 = vmatpush.xpose.msra.mxu0 0.0
    %725 = vmatpush.xpose.msra.mxu0 0.0
    %726 = vmatpush.xpose.msra.mxu0 0.0
    %727 = vmatpush.xpose.msra.mxu0 0.0
    %728 = vmatpush.xpose.msra.mxu0 0.0
    %729 = vmatpush.xpose.msra.mxu0 0.0
    %730 = vmatpush.xpose.msra.mxu0 %v713
    %731 = vmatmul.f32.gmra.mxu0 %v711
    %v732 = vpop.f32.mrf.mxu0
    %v733 = vadd.f32 0.0, %v732
    %734 = vdwg.mxu0
    %v735 = vsel %vm143, %v733, -inf
    %736 = vmax.xlane.f32.xlu0 %v735
    %v737 = vpop.xlane.xlu0 %736
    %v738 = vsub.f32 %v733, %v737
    %v739 = vmul.f32 %v738, 1.442695
    %v740 = vpow.pop %v739
    %v741 = vsel %vm143, %v740, 0.0
    %742 = vadd.xlane.f32.xlu0 %v741
    %v743 = vpop.xlane.xlu0 %742
    %v744 = vrcp.pop %v743
    %v745 = vmul.f32 %v743, %v744
    %v746 = vsub.f32 1.0, %v745
    %v747 = vmul.f32 %v744, %v746
    %v748 = vadd.f32 %v744, %v747
    %vm749 = vweird.f32 %v743
    %vm750 = vweird.f32 %v744
    %vm751 = vmor %vm749, %vm750
    %v752 = vsel %vm751, %v744, %v748
    %v753 = vand.u32 2147483647, %v743
    %vm754 = vcmp.eq.f32.partialorder %v753, 8.507059e+37
    %v755 = vand.u32 %v743, 2147483648
    %v756 = vor.u32 1.1754944e-38, %v755
    %v757 = vsel %vm754, %v756, %v752
    %v758 = vmul.f32 %v740, %v757
    %v759 = vadd.f32 %v568, %v758
    %760 = vrot.lane.b32.xlu0 %v135, 40
    %v761 = vpop.permute.xlu0 %760
    %v764 = vsel %vm143, %v758, 0
    %766 = vmatpush.msra.mxu0 0.0
    %767 = vmatpush.msra.mxu0 0.0
    %768 = vmatpush.msra.mxu0 0.0
    %769 = vmatpush.msra.mxu0 0.0
    %770 = vmatpush.msra.mxu0 0.0
    %771 = vmatpush.msra.mxu0 0.0
    %772 = vmatpush.msra.mxu0 0.0
    %773 = vmatpush.msra.mxu0 0.0
    %774 = vmatpush.msra.mxu0 0.0
    %775 = vmatpush.msra.mxu0 0.0
    %776 = vmatpush.msra.mxu0 0.0
    %777 = vmatpush.msra.mxu0 0.0
    %778 = vmatpush.msra.mxu0 0.0
    %779 = vmatpush.msra.mxu0 0.0
    %780 = vmatpush.msra.mxu0 0.0
    %781 = vmatpush.msra.mxu0 %v761
    %782 = vmatmul.f32.gmra.mxu0 %v764
    %v783 = vpop.f32.mrf.mxu0
    %v784 = vadd.f32 0.0, %v783
    %785 = vdwg.mxu0
    %786 = vrot.lane.b32.xlu0 %v138, 104
    %v787 = vpop.permute.xlu0 %786
    %788 = vrot.lane.b32.xlu0 %v138, 72
    %v789 = vpop.permute.xlu0 %788
    %v790 = vsel %vm143, %v787, 0
    %v792 = vsel %vm143, %v789, 0
    %794 = vmatpush.xpose.msra.mxu0 0.0
    %795 = vmatpush.xpose.msra.mxu0 0.0
    %796 = vmatpush.xpose.msra.mxu0 0.0
    %797 = vmatpush.xpose.msra.mxu0 0.0
    %798 = vmatpush.xpose.msra.mxu0 0.0
    %799 = vmatpush.xpose.msra.mxu0 0.0
    %800 = vmatpush.xpose.msra.mxu0 0.0
    %801 = vmatpush.xpose.msra.mxu0 0.0
    %802 = vmatpush.xpose.msra.mxu0 0.0
    %803 = vmatpush.xpose.msra.mxu0 0.0
    %804 = vmatpush.xpose.msra.mxu0 0.0
    %805 = vmatpush.xpose.msra.mxu0 0.0
    %806 = vmatpush.xpose.msra.mxu0 0.0
    %807 = vmatpush.xpose.msra.mxu0 0.0
    %808 = vmatpush.xpose.msra.mxu0 0.0
    %809 = vmatpush.xpose.msra.mxu0 %v792
    %810 = vmatmul.f32.gmra.mxu0 %v790
    %v811 = vpop.f32.mrf.mxu0
    %v812 = vadd.f32 0.0, %v811
    %813 = vdwg.mxu0
    %v814 = vsel %vm143, %v812, -inf
    %815 = vmax.xlane.f32.xlu0 %v814
    %v816 = vpop.xlane.xlu0 %815
    %v817 = vsub.f32 %v812, %v816
    %v818 = vmul.f32 %v817, 1.442695
    %v819 = vpow.pop %v818
    %v820 = vsel %vm143, %v819, 0.0
    %821 = vadd.xlane.f32.xlu0 %v820
    %v822 = vpop.xlane.xlu0 %821
    %v823 = vrcp.pop %v822
    %v824 = vmul.f32 %v822, %v823
    %v825 = vsub.f32 1.0, %v824
    %v826 = vmul.f32 %v823, %v825
    %v827 = vadd.f32 %v823, %v826
    %vm828 = vweird.f32 %v822
    %vm829 = vweird.f32 %v823
    %vm830 = vmor %vm828, %vm829
    %v831 = vsel %vm830, %v823, %v827
    %v832 = vand.u32 2147483647, %v822
    %vm833 = vcmp.eq.f32.partialorder %v832, 8.507059e+37
    %v834 = vand.u32 %v822, 2147483648
    %v835 = vor.u32 1.1754944e-38, %v834
    %v836 = vsel %vm833, %v835, %v831
    %v837 = vmul.f32 %v819, %v836
    %v838 = vadd.f32 %v647, %v837
    %839 = vrot.lane.b32.xlu0 %v138, 40
    %v840 = vpop.permute.xlu0 %839
    %v843 = vsel %vm143, %v837, 0
    %845 = vmatpush.msra.mxu0 0.0
    %846 = vmatpush.msra.mxu0 0.0
    %847 = vmatpush.msra.mxu0 0.0
    %848 = vmatpush.msra.mxu0 0.0
    %849 = vmatpush.msra.mxu0 0.0
    %850 = vmatpush.msra.mxu0 0.0
    %851 = vmatpush.msra.mxu0 0.0
    %852 = vmatpush.msra.mxu0 0.0
    %853 = vmatpush.msra.mxu0 0.0
    %854 = vmatpush.msra.mxu0 0.0
    %855 = vmatpush.msra.mxu0 0.0
    %856 = vmatpush.msra.mxu0 0.0
    %857 = vmatpush.msra.mxu0 0.0
    %858 = vmatpush.msra.mxu0 0.0
    %859 = vmatpush.msra.mxu0 0.0
    %860 = vmatpush.msra.mxu0 %v840
    %861 = vmatmul.f32.gmra.mxu0 %v843
    %v862 = vpop.f32.mrf.mxu0
    %v863 = vadd.f32 0.0, %v862
    %864 = vdwg.mxu0
    %s865 = scalar_lea.vmem %s3, 24
    %v866 = vld [vmem:[%s865] sm:$0xff]
    %v868 = vsel %vm143, %v784, 0
    %v871 = vsel %vm143, %v863, 0
    %873 = vmatpush.msra.mxu0 0.0
    %874 = vmatpush.msra.mxu0 0.0
    %875 = vmatpush.msra.mxu0 0.0
    %876 = vmatpush.msra.mxu0 0.0
    %877 = vmatpush.msra.mxu0 0.0
    %878 = vmatpush.msra.mxu0 0.0
    %879 = vmatpush.msra.mxu0 0.0
    %880 = vmatpush.msra.mxu0 0.0
    %881 = vmatpush.msra.mxu0 0.0
    %882 = vmatpush.msra.mxu0 0.0
    %883 = vmatpush.msra.mxu0 0.0
    %884 = vmatpush.msra.mxu0 0.0
    %885 = vmatpush.msra.mxu0 0.0
    %886 = vmatpush.msra.mxu0 0.0
    %887 = vmatpush.msra.mxu0 0.0
    %888 = vmatpush.msra.mxu0 %v866
    %889 = vmatmul.f32.gmra.mxu0 %v868
    %v890 = vpop.f32.mrf.mxu0
    %v891 = vadd.f32 0.0, %v890
    %892 = vmatmul.f32.gmra.mxu0 %v871
    %v893 = vpop.f32.mrf.mxu0
    %v894 = vadd.f32 0.0, %v893
    %895 = vdwg.mxu0
    %v896 = vadd.f32 %v705, %v891
    %v897 = vadd.f32 %v706, %v894
    %v898 = vld [vmem:[%s4] sm:$0x1]
    %v900 = vperm.slane %v898, 0
    %v902 = vadd.f32 %v896, %v900
    %v903 = vadd.f32 %v897, %v900
    %v904 = vadd.f32 %v79, %v902
    %v905 = vadd.f32 %v101, %v903
    %v906 = vsel %vm110, %v904, 0.0
    %907 = vadd.xlane.f32.xlu0 %v906
    %v908 = vpop.xlane.xlu0 %907
    %v909 = vsel %vm110, %v905, 0.0
    %910 = vadd.xlane.f32.xlu0 %v909
    %v911 = vpop.xlane.xlu0 %910
    %v912 = vrcp.pop 32.0
    %v913 = vmul.f32 32.0, %v912
    %v914 = vsub.f32 1.0, %v913
    %v915 = vmul.f32 %v912, %v914
    %v916 = vadd.f32 %v912, %v915
    %vm917 = vweird.f32 %v912
    %v918 = vsel %vm917, %v912, %v916
    %v919 = vmul.f32 %v908, %v918
    %v920 = vmul.f32 %v911, %v918
    %v921 = vsub.f32 %v904, %v919
    %v922 = vsub.f32 %v905, %v920
    %v923 = vmul.f32 %v921, %v921
    %v924 = vmul.f32 %v922, %v922
    %v925 = vsel %vm110, %v923, 0.0
    %926 = vadd.xlane.f32.xlu0 %v925
    %v927 = vpop.xlane.xlu0 %926
    %v928 = vsel %vm110, %v924, 0.0
    %929 = vadd.xlane.f32.xlu0 %v928
    %v930 = vpop.xlane.xlu0 %929
    %v931 = vmul.f32 %v927, %v918
    %v932 = vmul.f32 %v930, %v918
    %v933 = vadd.f32 %v931, 1e-05
    %v934 = vadd.f32 %v932, 1e-05
    %v935 = vrsqrt.pop %v933
    %v936 = vmul.f32 %v935, %v933
    %v937 = vmul.f32 %v936, %v935
    %v938 = vmul.f32 0.5, %v937
    %v939 = vsub.f32 1.5, %v938
    %v940 = vmul.f32 %v935, %v939
    %vm941 = vweird.f32 %v933
    %vm942 = vweird.f32 %v935
    %vm943 = vmor %vm941, %vm942
    %v944 = vsel %vm943, %v935, %v940
    %v945 = vrsqrt.pop %v934
    %v946 = vmul.f32 %v945, %v934
    %v947 = vmul.f32 %v946, %v945
    %v948 = vmul.f32 0.5, %v947
    %v949 = vsub.f32 1.5, %v948
    %v950 = vmul.f32 %v945, %v949
    %vm951 = vweird.f32 %v934
    %vm952 = vweird.f32 %v945
    %vm953 = vmor %vm951, %vm952
    %v954 = vsel %vm953, %v945, %v950
    %v955 = vmul.f32 %v921, %v944
    %v956 = vmul.f32 %v922, %v954
    %v957 = vld [vmem:[%s5] sm:$0x1]
    %v959 = vperm.slane %v957, 0
    %v961 = vmul.f32 %v955, %v959
    %v962 = vmul.f32 %v956, %v959
    %v963 = vld [vmem:[%s6] sm:$0x1]
    %v965 = vperm.slane %v963, 0
    %v967 = vadd.f32 %v961, %v965
    %v968 = vadd.f32 %v962, %v965
    %v970 = vrot.slane %v968, 7
    %v972 = vsel %vm66, %v967, %v970
    %vm973 = vcmask 254976
    %974 = vst.msk [vmem:[#allocation2] sm:$0x3] %vm973, %v972
    %v976 = vrot.slane %v967, 1
    %v978 = vsel %vm66, %v976, %v968
    %s979 = scalar_lea.vmem [#allocation2], 2
    %980 = vst.msk [vmem:[%s979] sm:$0x3] %vm973, %v978
    %v981 = vrot.slane %v967, 2
    %v983 = vrot.slane %v968, 1
    %v985 = vsel %vm66, %v981, %v983
    %s986 = scalar_lea.vmem [#allocation2], 4
    %987 = vst.msk [vmem:[%s986] sm:$0x3] %vm973, %v985
    %v988 = vrot.slane %v967, 3
    %v990 = vrot.slane %v968, 2
    %v992 = vsel %vm66, %v988, %v990
    %s993 = scalar_lea.vmem [#allocation2], 6
    %994 = vst.msk [vmem:[%s993] sm:$0x3] %vm973, %v992
    %v995 = vrot.slane %v967, 4
    %v997 = vrot.slane %v968, 3
    %v999 = vsel %vm66, %v995, %v997
    %s1000 = scalar_lea.vmem [#allocation2], 8
    %1001 = vst.msk [vmem:[%s1000] sm:$0x3] %vm973, %v999
    %v1002 = vrot.slane %v967, 5
    %v1004 = vrot.slane %v968, 4
    %v1006 = vsel %vm66, %v1002, %v1004
    %s1007 = scalar_lea.vmem [#allocation2], 10
    %1008 = vst.msk [vmem:[%s1007] sm:$0x3] %vm973, %v1006
    %v1009 = vrot.slane %v967, 6
    %v1011 = vrot.slane %v968, 5
    %v1013 = vsel %vm66, %v1009, %v1011
    %s1014 = scalar_lea.vmem [#allocation2], 12
    %1015 = vst.msk [vmem:[%s1014] sm:$0x3] %vm973, %v1013
    %v1016 = vrot.slane %v967, 7
    %v1018 = vrot.slane %v968, 6
    %v1020 = vsel %vm66, %v1016, %v1018
    %s1021 = scalar_lea.vmem [#allocation2], 14
    %1022 = vst.msk [vmem:[%s1021] sm:$0x3] %vm973, %v1020
    %v1023 = vmul.f32 %v759, 0.25
    %1024 = vst.msk [vmem:[#allocation4] sm:$0xff] %vm143, %v1023
    %v1025 = vmul.f32 %v838, 0.25
    %s1026 = scalar_lea.vmem [#allocation4], 8
    %1027 = vst.msk [vmem:[%s1026] sm:$0xff] %vm143, %v1025
    // Predicated region
    $region30: #{feature_attention.1} parent=1 // pred_check
      _
    $region31: #{feature_attention.1} parent=1 // pred_check_branch
      %1029 = sbr.rel (0) target = $region33
    $region32: #{feature_attention.1} parent=1 // pred_region
      %1031 = vsyncadd [#allocation3], 0
      %s1032 = sshll.u32 [#allocation2], 4
      %s1033 = int_to_ptr.vmem [resolvable:$true] %s1032
      %s1034 = sshll.u32 %s7, 4
      %s1035 = int_to_ptr.hbm [resolvable:$true] %s1034
      %1040 = dma.vmem_to_hbm [thread:$0]  %s1033, 256, %s1035, [#allocation3], 32, 32, 2
    $region33: #{feature_attention.1} parent=1 // pred_fallthru
      _
    // Predicated region
    $region34: #{feature_attention.1} parent=1 // pred_check
      _
    $region35: #{feature_attention.1} parent=1 // pred_check_branch
      %1042 = sbr.rel (0) target = $region37
    $region36: #{feature_attention.1} parent=1 // pred_region
      %1044 = vsyncadd [#allocation5], 0
      %s1045 = sshll.u32 [#allocation4], 4
      %s1046 = int_to_ptr.vmem [resolvable:$true] %s1045
      %s1047 = sshll.u32 %s8, 4
      %s1048 = int_to_ptr.hbm [resolvable:$true] %s1047
      %1053 = dma.vmem_to_hbm [thread:$0]  %s1046, 256, %s1048, [#allocation5], 128, 128, 8
    $region37: #{feature_attention.1} parent=1 // pred_fallthru
      _
    // Predicated region
    $region38: #{feature_attention.1} parent=1 // pred_check
      _
    $region39: #{feature_attention.1} parent=1 // pred_check_branch
      %1055 = sbr.rel (0) target = $region41
    $region40: #{feature_attention.1} parent=1 // pred_region
      %1057 = dma.done [#allocation3], 256
    $region41: #{feature_attention.1} parent=1 // pred_fallthru
      _
    // Predicated region
    $region42: #{feature_attention.1} parent=1 // pred_check
      _
    $region43: #{feature_attention.1} parent=1 // pred_check_branch
      %1059 = sbr.rel (0) target = $region45
    $region44: #{feature_attention.1} parent=1 // pred_region
      %1061 = dma.done [#allocation5], 256
    $region45: #{feature_attention.1} parent=1 // pred_fallthru
      _
    %1062 = vsyncpa [#allocation3], 1
    %1063 = vsyncpa [#allocation5], 1

</llo_original>
